<compile_context>
chip_gen: v7x
topology: tpu7x:2x2x1
jax: 0.10.0
libtpu: 0.0.40
codegen_flags: <defaults>
</compile_context>

<pallas_src>
import functools
import math

import jax
import jax.numpy as jnp
from jax import lax
from jax.experimental import pallas as pl
from jax.experimental.pallas import tpu as pltpu


# ------------------------------ Pallas kernel --------------------------------


def _nce_fwd_kernel(idx_ref, x_ref, mem_hbm, invz_ref, out_ref, wbuf, sems,
                    *, T, K1, K1_TILE):
    """One K-tile of: gather memory rows by idx, s = <x_b, w_{b,k}>,
    out = exp(s / T) * (1/Z), with padded columns forced to 0.

    idx_ref : (B, K1)        int32 SMEM (scalar prefetch)
    x_ref   : (B, D)         f32   VMEM
    mem_hbm : (nOut, D)      f32   raw HBM ref (manual row-gather DMAs)
    invz_ref: (1, 1)         f32   SMEM scalar (1/Z; 1.0 on the first batch)
    out_ref : (B, K1_TILE)   f32   VMEM (lane-dense tile of the padded output)
    wbuf    : (B*K1_TILE, D) f32   VMEM scratch for the gathered rows
    sems    : (B,)           DMA semaphores (one per batch row)
    """
    B, D = x_ref.shape
    tile = pl.program_id(0)
    k_start = tile * K1_TILE
    # Number of real (non-padded) sample columns covered by this tile (>= 1).
    n_valid = jnp.minimum(K1 - k_start, K1_TILE)

    # ----------------------------- gather (HBM -> VMEM, row-granular DMAs) ---
    # All starts are issued before any wait so the copies overlap each other;
    # loops (not a Python unroll) keep descriptor-issue code bounded.
    for b in range(B):
        @pl.loop(0, n_valid)
        def _start(k, b=b):
            row = idx_ref[b, k_start + k]
            pltpu.make_async_copy(
                mem_hbm.at[pl.ds(row, 1), :],                 # (1, D) HBM row
                wbuf.at[pl.ds(b * K1_TILE + k, 1), :],        # (1, D) VMEM slot
                sems.at[b]).start()

    for b in range(B):
        @pl.loop(0, n_valid)
        def _wait(k, b=b):
            # Only the semaphore + byte count (one (1, D) row) matter here.
            pltpu.make_async_copy(
                mem_hbm.at[pl.ds(0, 1), :],
                wbuf.at[pl.ds(0, 1), :],
                sems.at[b]).wait()

    # --------------------------------------------------------------- compute -
    # Single cast pass over the whole gathered block, then ONE MXU matmul for
    # all batch rows: (B, D) x (D, B*K1_TILE), bf16 operands, f32 accumulation.
    inv_z = invz_ref[0, 0]
    inv_t = 1.0 / T
    x_bf = x_ref[...].astype(jnp.bfloat16)                    # (B, D)
    w_bf = wbuf[...].astype(jnp.bfloat16)                     # (B*K1_TILE, D)
    s = lax.dot_general(                                      # (B, B*K1_TILE)
        x_bf, w_bf,
        dimension_numbers=(((1,), (1,)), ((), ())),           # contract over D
        preferred_element_type=jnp.float32)

    # Block-diagonal selection: out row b keeps only s[b, b*K1_TILE : +K1_TILE].
    row = lax.broadcasted_iota(jnp.int32, (B, 1), 0)
    s_diag = jnp.zeros((B, K1_TILE), jnp.float32)
    for b2 in range(B):
        blk = s[:, b2 * K1_TILE:(b2 + 1) * K1_TILE]           # static slice
        s_diag = s_diag + jnp.where(row == b2, blk, 0.0)

    # Fused epilogue: exp(./T) on the EUP, the 1/Z scalar multiply, and an
    # iota mask that zeroes padded columns (their wbuf rows were never DMA'd),
    # keeping the single full-tile store finite and deterministic.
    col = k_start + lax.broadcasted_iota(jnp.int32, (B, K1_TILE), 1)
    vals = jnp.exp(s_diag * inv_t) * inv_z
    out_ref[...] = jnp.where(col < K1, vals, 0.0)


# -------------------------------- wrapper -------------------------------------


def _pick_k1_tile(K1_pad, B, D):
    # Prefer 512/256-lane tiles (v6e/v7x MXUs are 256 wide) when K allows,
    # capped so the f32 gather scratch stays well inside VMEM (v7x: 64 MiB).
    for cand in (512, 256, 128):
        if K1_pad % cand == 0 and B * cand * D * 4 <= (16 << 20):
            return cand
    return 128


def nce_forward_pallas(x, memory, idx, inv_z, T):
    """out[b, k] = exp(<memory[idx[b, k]], x[b]> / T) * (1/Z), fully on-TPU."""
    B, D = x.shape
    K1 = idx.shape[1]
    K1_pad = ((K1 + 127) // 128) * 128       # lane-dense padded output width
    K1_TILE = _pick_k1_tile(K1_pad, B, D)
    num_tiles = K1_pad // K1_TILE

    out_pad = pl.pallas_call(
        functools.partial(_nce_fwd_kernel, T=float(T), K1=K1, K1_TILE=K1_TILE),
        out_shape=jax.ShapeDtypeStruct((B, K1_pad), jnp.float32),
        grid_spec=pltpu.PrefetchScalarGridSpec(
            num_scalar_prefetch=1,                       # idx -> SMEM
            grid=(num_tiles,),
            in_specs=[
                pl.BlockSpec((B, D), lambda t, idx_ref: (0, 0)),       # x
                pl.BlockSpec(memory_space=pl.ANY),                     # memory
                pl.BlockSpec(memory_space=pltpu.MemorySpace.SMEM),     # 1/Z
            ],
            out_specs=pl.BlockSpec((B, K1_TILE), lambda t, idx_ref: (0, t)),
            scratch_shapes=[
                pltpu.VMEM((B * K1_TILE, D), jnp.float32),   # gathered rows
                pltpu.SemaphoreType.DMA((B,)),
            ],
        ),
        compiler_params=pltpu.CompilerParams(
            dimension_semantics=("parallel",)),   # shards K tiles on v7x's 2 TCs
    )(idx, x, memory, inv_z)
    return out_pad[:, :K1]


class NCEAverage:
    """JAX/Pallas port of the PyTorch NCEAverage forward pass (forward only)."""

    def __init__(self, inputSize, outputSize, K, T=0.07, momentum=0.5,
                 key=jax.random.PRNGKey(0)):
        self.nLem = outputSize
        self.K = K
        self.T = float(T)
        self.momentum = float(momentum)
        self.z = None                 # normalization constant, set on 1st call
        stdv = 1.0 / math.sqrt(inputSize / 3)
        # torch.rand(outputSize, inputSize) * 2*stdv - stdv
        self.memory = (
            jax.random.uniform(key, (outputSize, inputSize), jnp.float32)
            * (2.0 * stdv) - stdv)

    def forward(self, x, y, key):
        B = x.shape[0]
        outputSize = self.memory.shape[0]

        # AliasMethod over uniform unigrams == uniform integer sampling;
        # idx.select(1, 0).copy_(y)
        idx = jax.random.randint(key, (B, self.K + 1), 0, outputSize, jnp.int32)
        idx = idx.at[:, 0].set(y)

        if self.z is None:
            # First batch: run with 1/Z = 1 (raw scores), then set
            # Z = mean(out) * outputSize entirely on device (no host sync).
            one = jnp.ones((1, 1), jnp.float32)
            out_raw = nce_forward_pallas(x, self.memory, idx, one, self.T)
            self.z = jnp.mean(out_raw) * outputSize
            return out_raw / self.z

        # Steady state: the /Z multiply is fused into the single pallas_call.
        inv_z = jnp.reshape(1.0 / self.z, (1, 1)).astype(jnp.float32)
        return nce_forward_pallas(x, self.memory, idx, inv_z, self.T)


# --------------------------------- main ---------------------------------------


if __name__ == "__main__":
    # Small, TPU-friendly shapes consistent with the module's forward:
    #   batch=8, inputSize=128, outputSize(memory rows)=256, K=15 negatives
    B, D, N, K = 8, 128, 256, 15
    T, momentum = 0.07, 0.5

    root = jax.random.PRNGKey(0)
    k_mem, k_x1, k_y1, k_i1, k_x2, k_y2, k_i2 = jax.random.split(root, 7)

    nce = NCEAverage(inputSize=D, outputSize=N, K=K, T=T,
                     momentum=momentum, key=k_mem)

    def make_batch(kx, ky):
        x = jax.random.normal(kx, (B, D), jnp.float32)
        x = x / jnp.linalg.norm(x, axis=1, keepdims=True)  # typical NCE feats
        y = jax.random.randint(ky, (B,), 0, N, jnp.int32)
        return x, y

    x1, y1 = make_batch(k_x1, k_y1)
    x2, y2 = make_batch(k_x2, k_y2)

    out1 = jax.block_until_ready(nce.forward(x1, y1, k_i1))  # sets Z
    out2 = jax.block_until_ready(nce.forward(x2, y2, k_i2))  # fused /Z path

    # Pure-JAX reference with identical idx draws / Z rule (bf16-rounded
    # operands, f32 accumulation to match the MXU path).
    # TODO(synk): use an f32 matmul if exact parity with a full-f32 PyTorch
    #             reference is required (bf16 rounding is amplified ~1/T).
    def draw_idx(key, y):
        idx = jax.random.randint(key, (B, K + 1), 0, N, jnp.int32)
        return idx.at[:, 0].set(y)

    def ref_raw(x, idx):
        w = nce.memory[idx.reshape(-1)].reshape(B, K + 1, D)
        wb = w.astype(jnp.bfloat16).astype(jnp.float32)
        xb = x.astype(jnp.bfloat16).astype(jnp.float32)
        s = jnp.einsum("bkd,bd->bk", wb, xb,
                       precision=jax.lax.Precision.HIGHEST)
        return jnp.exp(s / T)

    idx1 = draw_idx(k_i1, y1)
    idx2 = draw_idx(k_i2, y2)
    raw1 = ref_raw(x1, idx1)
    z_ref = jnp.mean(raw1) * N
    ref1 = raw1 / z_ref
    ref2 = ref_raw(x2, idx2) / z_ref

    assert out1.shape == (B, K + 1) and out2.shape == (B, K + 1)
    assert bool(jnp.allclose(out1, ref1, rtol=1e-3, atol=1e-6))
    assert bool(jnp.allclose(out2, ref2, rtol=1e-3, atol=1e-6))
    print("KERNEL_OK")
</pallas_src>

<mosaic_0001>
module attributes {stable_mosaic.version = 11 : i64} {
  func.func @_nce_fwd_kernel(%arg0: i32, %arg1: memref<8x16xi32, #tpu.memory_space<smem>>, %arg2: memref<8x128xf32, #tpu.memory_space<vmem>>, %arg3: memref<256x128xf32, #tpu.memory_space<any>>, %arg4: memref<1x1xf32, #tpu.memory_space<smem>>, %arg5: memref<8x128xf32, #tpu.memory_space<vmem>>, %arg6: memref<1024x128xf32, #tpu.memory_space<vmem>>, %arg7: memref<8x!tpu.dma_semaphore, #tpu.memory_space<semaphore_mem>>) attributes {dimension_semantics = [#tpu.dimension_semantics<parallel>], iteration_bounds = array<i64: 1>, scalar_prefetch = 1 : i64, scratch_operands = 2 : i64, tpu.core_type = #tpu.core_type<tc>, window_params = [{pipeline_mode = #tpu.pipeline_mode<synchronous>, transform_indices = @transform_0, window_bounds = array<i64: 8, 128>}, {}, {transform_indices = @transform_2, window_bounds = array<i64: 1, 1>}, {transform_indices = @transform_3, window_bounds = array<i64: 8, 128>}]} {
    %c128_i32 = arith.constant 128 : i32
    %0 = arith.muli %arg0, %c128_i32 : i32
    %c16_i32 = arith.constant 16 : i32
    %1 = arith.subi %c16_i32, %0 : i32
    %c128_i32_0 = arith.constant 128 : i32
    %2 = arith.minsi %1, %c128_i32_0 : i32
    %c0_i32 = arith.constant 0 : i32
    %3 = arith.subi %2, %c0_i32 : i32
    %c1_i32 = arith.constant 1 : i32
    %c1_i32_1 = arith.constant 1 : i32
    %4 = arith.subi %c1_i32, %c1_i32_1 : i32
    %5 = arith.addi %3, %4 : i32
    %c1_i32_2 = arith.constant 1 : i32
    %6 = arith.divsi %5, %c1_i32_2 : i32
    %c1_i32_3 = arith.constant 1 : i32
    %c0_i32_4 = arith.constant 0 : i32
    %c0_i32_5 = arith.constant 0 : i32
    %7 = arith.subi %6, %c0_i32_5 : i32
    %8 = arith.addi %c0_i32_5, %7 : i32
    %c1_i32_6 = arith.constant 1 : i32
    scf.for %arg8 = %c0_i32_5 to %8 step %c1_i32_6  : i32 {
      %184 = arith.muli %arg8, %c1_i32_3 : i32
      %185 = arith.addi %c0_i32_4, %184 : i32
      %186 = arith.addi %0, %185 : i32
      %c0_148 = arith.constant 0 : index
      %187 = arith.index_cast %186 : i32 to index
      %188 = memref.load %arg1[%c0_148, %187] : memref<8x16xi32, #tpu.memory_space<smem>>
      %c0_i32_149 = arith.constant 0 : i32
      %189 = arith.addi %c0_i32_149, %185 : i32
      %c0_i32_150 = arith.constant 0 : i32
      %c0_i32_151 = arith.constant 0 : i32
      %190 = tpu.memref_slice %arg3[%188, %c0_i32_151] : memref<256x128xf32, #tpu.memory_space<any>> -> memref<1x128xf32, #tpu.memory_space<any>>
      %c0_i32_152 = arith.constant 0 : i32
      %191 = tpu.memref_slice %arg6[%189, %c0_i32_152] : memref<1024x128xf32, #tpu.memory_space<vmem>> -> memref<1x128xf32, #tpu.memory_space<vmem>>
      %192 = tpu.memref_slice %arg7[%c0_i32_150] : memref<8x!tpu.dma_semaphore, #tpu.memory_space<semaphore_mem>> -> memref<1x!tpu.dma_semaphore, #tpu.memory_space<semaphore_mem>>
      %193 = tpu.memref_squeeze %192 : memref<1x!tpu.dma_semaphore, #tpu.memory_space<semaphore_mem>> -> memref<!tpu.dma_semaphore, #tpu.memory_space<semaphore_mem>>
      tpu.enqueue_dma source(%190 : memref<1x128xf32, #tpu.memory_space<any>>) target(%191 : memref<1x128xf32, #tpu.memory_space<vmem>>) target_semaphore(%193 : memref<!tpu.dma_semaphore, #tpu.memory_space<semaphore_mem>>)
    }
    %c0_i32_7 = arith.constant 0 : i32
    %9 = arith.subi %2, %c0_i32_7 : i32
    %c1_i32_8 = arith.constant 1 : i32
    %c1_i32_9 = arith.constant 1 : i32
    %10 = arith.subi %c1_i32_8, %c1_i32_9 : i32
    %11 = arith.addi %9, %10 : i32
    %c1_i32_10 = arith.constant 1 : i32
    %12 = arith.divsi %11, %c1_i32_10 : i32
    %c1_i32_11 = arith.constant 1 : i32
    %c0_i32_12 = arith.constant 0 : i32
    %c0_i32_13 = arith.constant 0 : i32
    %13 = arith.subi %12, %c0_i32_13 : i32
    %14 = arith.addi %c0_i32_13, %13 : i32
    %c1_i32_14 = arith.constant 1 : i32
    scf.for %arg8 = %c0_i32_13 to %14 step %c1_i32_14  : i32 {
      %184 = arith.muli %arg8, %c1_i32_11 : i32
      %185 = arith.addi %c0_i32_12, %184 : i32
      %186 = arith.addi %0, %185 : i32
      %c1 = arith.constant 1 : index
      %187 = arith.index_cast %186 : i32 to index
      %188 = memref.load %arg1[%c1, %187] : memref<8x16xi32, #tpu.memory_space<smem>>
      %c128_i32_148 = arith.constant 128 : i32
      %189 = arith.addi %c128_i32_148, %185 : i32
      %c1_i32_149 = arith.constant 1 : i32
      %c0_i32_150 = arith.constant 0 : i32
      %190 = tpu.memref_slice %arg3[%188, %c0_i32_150] : memref<256x128xf32, #tpu.memory_space<any>> -> memref<1x128xf32, #tpu.memory_space<any>>
      %c0_i32_151 = arith.constant 0 : i32
      %191 = tpu.memref_slice %arg6[%189, %c0_i32_151] : memref<1024x128xf32, #tpu.memory_space<vmem>> -> memref<1x128xf32, #tpu.memory_space<vmem>>
      %192 = tpu.memref_slice %arg7[%c1_i32_149] : memref<8x!tpu.dma_semaphore, #tpu.memory_space<semaphore_mem>> -> memref<1x!tpu.dma_semaphore, #tpu.memory_space<semaphore_mem>>
      %193 = tpu.memref_squeeze %192 : memref<1x!tpu.dma_semaphore, #tpu.memory_space<semaphore_mem>> -> memref<!tpu.dma_semaphore, #tpu.memory_space<semaphore_mem>>
      tpu.enqueue_dma source(%190 : memref<1x128xf32, #tpu.memory_space<any>>) target(%191 : memref<1x128xf32, #tpu.memory_space<vmem>>) target_semaphore(%193 : memref<!tpu.dma_semaphore, #tpu.memory_space<semaphore_mem>>)
    }
    %c0_i32_15 = arith.constant 0 : i32
    %15 = arith.subi %2, %c0_i32_15 : i32
    %c1_i32_16 = arith.constant 1 : i32
    %c1_i32_17 = arith.constant 1 : i32
    %16 = arith.subi %c1_i32_16, %c1_i32_17 : i32
    %17 = arith.addi %15, %16 : i32
    %c1_i32_18 = arith.constant 1 : i32
    %18 = arith.divsi %17, %c1_i32_18 : i32
    %c1_i32_19 = arith.constant 1 : i32
    %c0_i32_20 = arith.constant 0 : i32
    %c0_i32_21 = arith.constant 0 : i32
    %19 = arith.subi %18, %c0_i32_21 : i32
    %20 = arith.addi %c0_i32_21, %19 : i32
    %c1_i32_22 = arith.constant 1 : i32
    scf.for %arg8 = %c0_i32_21 to %20 step %c1_i32_22  : i32 {
      %184 = arith.muli %arg8, %c1_i32_19 : i32
      %185 = arith.addi %c0_i32_20, %184 : i32
      %186 = arith.addi %0, %185 : i32
      %c2 = arith.constant 2 : index
      %187 = arith.index_cast %186 : i32 to index
      %188 = memref.load %arg1[%c2, %187] : memref<8x16xi32, #tpu.memory_space<smem>>
      %c256_i32 = arith.constant 256 : i32
      %189 = arith.addi %c256_i32, %185 : i32
      %c2_i32_148 = arith.constant 2 : i32
      %c0_i32_149 = arith.constant 0 : i32
      %190 = tpu.memref_slice %arg3[%188, %c0_i32_149] : memref<256x128xf32, #tpu.memory_space<any>> -> memref<1x128xf32, #tpu.memory_space<any>>
      %c0_i32_150 = arith.constant 0 : i32
      %191 = tpu.memref_slice %arg6[%189, %c0_i32_150] : memref<1024x128xf32, #tpu.memory_space<vmem>> -> memref<1x128xf32, #tpu.memory_space<vmem>>
      %192 = tpu.memref_slice %arg7[%c2_i32_148] : memref<8x!tpu.dma_semaphore, #tpu.memory_space<semaphore_mem>> -> memref<1x!tpu.dma_semaphore, #tpu.memory_space<semaphore_mem>>
      %193 = tpu.memref_squeeze %192 : memref<1x!tpu.dma_semaphore, #tpu.memory_space<semaphore_mem>> -> memref<!tpu.dma_semaphore, #tpu.memory_space<semaphore_mem>>
      tpu.enqueue_dma source(%190 : memref<1x128xf32, #tpu.memory_space<any>>) target(%191 : memref<1x128xf32, #tpu.memory_space<vmem>>) target_semaphore(%193 : memref<!tpu.dma_semaphore, #tpu.memory_space<semaphore_mem>>)
    }
    %c0_i32_23 = arith.constant 0 : i32
    %21 = arith.subi %2, %c0_i32_23 : i32
    %c1_i32_24 = arith.constant 1 : i32
    %c1_i32_25 = arith.constant 1 : i32
    %22 = arith.subi %c1_i32_24, %c1_i32_25 : i32
    %23 = arith.addi %21, %22 : i32
    %c1_i32_26 = arith.constant 1 : i32
    %24 = arith.divsi %23, %c1_i32_26 : i32
    %c1_i32_27 = arith.constant 1 : i32
    %c0_i32_28 = arith.constant 0 : i32
    %c0_i32_29 = arith.constant 0 : i32
    %25 = arith.subi %24, %c0_i32_29 : i32
    %26 = arith.addi %c0_i32_29, %25 : i32
    %c1_i32_30 = arith.constant 1 : i32
    scf.for %arg8 = %c0_i32_29 to %26 step %c1_i32_30  : i32 {
      %184 = arith.muli %arg8, %c1_i32_27 : i32
      %185 = arith.addi %c0_i32_28, %184 : i32
      %186 = arith.addi %0, %185 : i32
      %c3 = arith.constant 3 : index
      %187 = arith.index_cast %186 : i32 to index
      %188 = memref.load %arg1[%c3, %187] : memref<8x16xi32, #tpu.memory_space<smem>>
      %c384_i32 = arith.constant 384 : i32
      %189 = arith.addi %c384_i32, %185 : i32
      %c3_i32_148 = arith.constant 3 : i32
      %c0_i32_149 = arith.constant 0 : i32
      %190 = tpu.memref_slice %arg3[%188, %c0_i32_149] : memref<256x128xf32, #tpu.memory_space<any>> -> memref<1x128xf32, #tpu.memory_space<any>>
      %c0_i32_150 = arith.constant 0 : i32
      %191 = tpu.memref_slice %arg6[%189, %c0_i32_150] : memref<1024x128xf32, #tpu.memory_space<vmem>> -> memref<1x128xf32, #tpu.memory_space<vmem>>
      %192 = tpu.memref_slice %arg7[%c3_i32_148] : memref<8x!tpu.dma_semaphore, #tpu.memory_space<semaphore_mem>> -> memref<1x!tpu.dma_semaphore, #tpu.memory_space<semaphore_mem>>
      %193 = tpu.memref_squeeze %192 : memref<1x!tpu.dma_semaphore, #tpu.memory_space<semaphore_mem>> -> memref<!tpu.dma_semaphore, #tpu.memory_space<semaphore_mem>>
      tpu.enqueue_dma source(%190 : memref<1x128xf32, #tpu.memory_space<any>>) target(%191 : memref<1x128xf32, #tpu.memory_space<vmem>>) target_semaphore(%193 : memref<!tpu.dma_semaphore, #tpu.memory_space<semaphore_mem>>)
    }
    %c0_i32_31 = arith.constant 0 : i32
    %27 = arith.subi %2, %c0_i32_31 : i32
    %c1_i32_32 = arith.constant 1 : i32
    %c1_i32_33 = arith.constant 1 : i32
    %28 = arith.subi %c1_i32_32, %c1_i32_33 : i32
    %29 = arith.addi %27, %28 : i32
    %c1_i32_34 = arith.constant 1 : i32
    %30 = arith.divsi %29, %c1_i32_34 : i32
    %c1_i32_35 = arith.constant 1 : i32
    %c0_i32_36 = arith.constant 0 : i32
    %c0_i32_37 = arith.constant 0 : i32
    %31 = arith.subi %30, %c0_i32_37 : i32
    %32 = arith.addi %c0_i32_37, %31 : i32
    %c1_i32_38 = arith.constant 1 : i32
    scf.for %arg8 = %c0_i32_37 to %32 step %c1_i32_38  : i32 {
      %184 = arith.muli %arg8, %c1_i32_35 : i32
      %185 = arith.addi %c0_i32_36, %184 : i32
      %186 = arith.addi %0, %185 : i32
      %c4 = arith.constant 4 : index
      %187 = arith.index_cast %186 : i32 to index
      %188 = memref.load %arg1[%c4, %187] : memref<8x16xi32, #tpu.memory_space<smem>>
      %c512_i32 = arith.constant 512 : i32
      %189 = arith.addi %c512_i32, %185 : i32
      %c4_i32_148 = arith.constant 4 : i32
      %c0_i32_149 = arith.constant 0 : i32
      %190 = tpu.memref_slice %arg3[%188, %c0_i32_149] : memref<256x128xf32, #tpu.memory_space<any>> -> memref<1x128xf32, #tpu.memory_space<any>>
      %c0_i32_150 = arith.constant 0 : i32
      %191 = tpu.memref_slice %arg6[%189, %c0_i32_150] : memref<1024x128xf32, #tpu.memory_space<vmem>> -> memref<1x128xf32, #tpu.memory_space<vmem>>
      %192 = tpu.memref_slice %arg7[%c4_i32_148] : memref<8x!tpu.dma_semaphore, #tpu.memory_space<semaphore_mem>> -> memref<1x!tpu.dma_semaphore, #tpu.memory_space<semaphore_mem>>
      %193 = tpu.memref_squeeze %192 : memref<1x!tpu.dma_semaphore, #tpu.memory_space<semaphore_mem>> -> memref<!tpu.dma_semaphore, #tpu.memory_space<semaphore_mem>>
      tpu.enqueue_dma source(%190 : memref<1x128xf32, #tpu.memory_space<any>>) target(%191 : memref<1x128xf32, #tpu.memory_space<vmem>>) target_semaphore(%193 : memref<!tpu.dma_semaphore, #tpu.memory_space<semaphore_mem>>)
    }
    %c0_i32_39 = arith.constant 0 : i32
    %33 = arith.subi %2, %c0_i32_39 : i32
    %c1_i32_40 = arith.constant 1 : i32
    %c1_i32_41 = arith.constant 1 : i32
    %34 = arith.subi %c1_i32_40, %c1_i32_41 : i32
    %35 = arith.addi %33, %34 : i32
    %c1_i32_42 = arith.constant 1 : i32
    %36 = arith.divsi %35, %c1_i32_42 : i32
    %c1_i32_43 = arith.constant 1 : i32
    %c0_i32_44 = arith.constant 0 : i32
    %c0_i32_45 = arith.constant 0 : i32
    %37 = arith.subi %36, %c0_i32_45 : i32
    %38 = arith.addi %c0_i32_45, %37 : i32
    %c1_i32_46 = arith.constant 1 : i32
    scf.for %arg8 = %c0_i32_45 to %38 step %c1_i32_46  : i32 {
      %184 = arith.muli %arg8, %c1_i32_43 : i32
      %185 = arith.addi %c0_i32_44, %184 : i32
      %186 = arith.addi %0, %185 : i32
      %c5 = arith.constant 5 : index
      %187 = arith.index_cast %186 : i32 to index
      %188 = memref.load %arg1[%c5, %187] : memref<8x16xi32, #tpu.memory_space<smem>>
      %c640_i32 = arith.constant 640 : i32
      %189 = arith.addi %c640_i32, %185 : i32
      %c5_i32_148 = arith.constant 5 : i32
      %c0_i32_149 = arith.constant 0 : i32
      %190 = tpu.memref_slice %arg3[%188, %c0_i32_149] : memref<256x128xf32, #tpu.memory_space<any>> -> memref<1x128xf32, #tpu.memory_space<any>>
      %c0_i32_150 = arith.constant 0 : i32
      %191 = tpu.memref_slice %arg6[%189, %c0_i32_150] : memref<1024x128xf32, #tpu.memory_space<vmem>> -> memref<1x128xf32, #tpu.memory_space<vmem>>
      %192 = tpu.memref_slice %arg7[%c5_i32_148] : memref<8x!tpu.dma_semaphore, #tpu.memory_space<semaphore_mem>> -> memref<1x!tpu.dma_semaphore, #tpu.memory_space<semaphore_mem>>
      %193 = tpu.memref_squeeze %192 : memref<1x!tpu.dma_semaphore, #tpu.memory_space<semaphore_mem>> -> memref<!tpu.dma_semaphore, #tpu.memory_space<semaphore_mem>>
      tpu.enqueue_dma source(%190 : memref<1x128xf32, #tpu.memory_space<any>>) target(%191 : memref<1x128xf32, #tpu.memory_space<vmem>>) target_semaphore(%193 : memref<!tpu.dma_semaphore, #tpu.memory_space<semaphore_mem>>)
    }
    %c0_i32_47 = arith.constant 0 : i32
    %39 = arith.subi %2, %c0_i32_47 : i32
    %c1_i32_48 = arith.constant 1 : i32
    %c1_i32_49 = arith.constant 1 : i32
    %40 = arith.subi %c1_i32_48, %c1_i32_49 : i32
    %41 = arith.addi %39, %40 : i32
    %c1_i32_50 = arith.constant 1 : i32
    %42 = arith.divsi %41, %c1_i32_50 : i32
    %c1_i32_51 = arith.constant 1 : i32
    %c0_i32_52 = arith.constant 0 : i32
    %c0_i32_53 = arith.constant 0 : i32
    %43 = arith.subi %42, %c0_i32_53 : i32
    %44 = arith.addi %c0_i32_53, %43 : i32
    %c1_i32_54 = arith.constant 1 : i32
    scf.for %arg8 = %c0_i32_53 to %44 step %c1_i32_54  : i32 {
      %184 = arith.muli %arg8, %c1_i32_51 : i32
      %185 = arith.addi %c0_i32_52, %184 : i32
      %186 = arith.addi %0, %185 : i32
      %c6 = arith.constant 6 : index
      %187 = arith.index_cast %186 : i32 to index
      %188 = memref.load %arg1[%c6, %187] : memref<8x16xi32, #tpu.memory_space<smem>>
      %c768_i32 = arith.constant 768 : i32
      %189 = arith.addi %c768_i32, %185 : i32
      %c6_i32_148 = arith.constant 6 : i32
      %c0_i32_149 = arith.constant 0 : i32
      %190 = tpu.memref_slice %arg3[%188, %c0_i32_149] : memref<256x128xf32, #tpu.memory_space<any>> -> memref<1x128xf32, #tpu.memory_space<any>>
      %c0_i32_150 = arith.constant 0 : i32
      %191 = tpu.memref_slice %arg6[%189, %c0_i32_150] : memref<1024x128xf32, #tpu.memory_space<vmem>> -> memref<1x128xf32, #tpu.memory_space<vmem>>
      %192 = tpu.memref_slice %arg7[%c6_i32_148] : memref<8x!tpu.dma_semaphore, #tpu.memory_space<semaphore_mem>> -> memref<1x!tpu.dma_semaphore, #tpu.memory_space<semaphore_mem>>
      %193 = tpu.memref_squeeze %192 : memref<1x!tpu.dma_semaphore, #tpu.memory_space<semaphore_mem>> -> memref<!tpu.dma_semaphore, #tpu.memory_space<semaphore_mem>>
      tpu.enqueue_dma source(%190 : memref<1x128xf32, #tpu.memory_space<any>>) target(%191 : memref<1x128xf32, #tpu.memory_space<vmem>>) target_semaphore(%193 : memref<!tpu.dma_semaphore, #tpu.memory_space<semaphore_mem>>)
    }
    %c0_i32_55 = arith.constant 0 : i32
    %45 = arith.subi %2, %c0_i32_55 : i32
    %c1_i32_56 = arith.constant 1 : i32
    %c1_i32_57 = arith.constant 1 : i32
    %46 = arith.subi %c1_i32_56, %c1_i32_57 : i32
    %47 = arith.addi %45, %46 : i32
    %c1_i32_58 = arith.constant 1 : i32
    %48 = arith.divsi %47, %c1_i32_58 : i32
    %c1_i32_59 = arith.constant 1 : i32
    %c0_i32_60 = arith.constant 0 : i32
    %c0_i32_61 = arith.constant 0 : i32
    %49 = arith.subi %48, %c0_i32_61 : i32
    %50 = arith.addi %c0_i32_61, %49 : i32
    %c1_i32_62 = arith.constant 1 : i32
    scf.for %arg8 = %c0_i32_61 to %50 step %c1_i32_62  : i32 {
      %184 = arith.muli %arg8, %c1_i32_59 : i32
      %185 = arith.addi %c0_i32_60, %184 : i32
      %186 = arith.addi %0, %185 : i32
      %c7 = arith.constant 7 : index
      %187 = arith.index_cast %186 : i32 to index
      %188 = memref.load %arg1[%c7, %187] : memref<8x16xi32, #tpu.memory_space<smem>>
      %c896_i32 = arith.constant 896 : i32
      %189 = arith.addi %c896_i32, %185 : i32
      %c7_i32_148 = arith.constant 7 : i32
      %c0_i32_149 = arith.constant 0 : i32
      %190 = tpu.memref_slice %arg3[%188, %c0_i32_149] : memref<256x128xf32, #tpu.memory_space<any>> -> memref<1x128xf32, #tpu.memory_space<any>>
      %c0_i32_150 = arith.constant 0 : i32
      %191 = tpu.memref_slice %arg6[%189, %c0_i32_150] : memref<1024x128xf32, #tpu.memory_space<vmem>> -> memref<1x128xf32, #tpu.memory_space<vmem>>
      %192 = tpu.memref_slice %arg7[%c7_i32_148] : memref<8x!tpu.dma_semaphore, #tpu.memory_space<semaphore_mem>> -> memref<1x!tpu.dma_semaphore, #tpu.memory_space<semaphore_mem>>
      %193 = tpu.memref_squeeze %192 : memref<1x!tpu.dma_semaphore, #tpu.memory_space<semaphore_mem>> -> memref<!tpu.dma_semaphore, #tpu.memory_space<semaphore_mem>>
      tpu.enqueue_dma source(%190 : memref<1x128xf32, #tpu.memory_space<any>>) target(%191 : memref<1x128xf32, #tpu.memory_space<vmem>>) target_semaphore(%193 : memref<!tpu.dma_semaphore, #tpu.memory_space<semaphore_mem>>)
    }
    %c0_i32_63 = arith.constant 0 : i32
    %51 = arith.subi %2, %c0_i32_63 : i32
    %c1_i32_64 = arith.constant 1 : i32
    %c1_i32_65 = arith.constant 1 : i32
    %52 = arith.subi %c1_i32_64, %c1_i32_65 : i32
    %53 = arith.addi %51, %52 : i32
    %c1_i32_66 = arith.constant 1 : i32
    %54 = arith.divsi %53, %c1_i32_66 : i32
    %c1_i32_67 = arith.constant 1 : i32
    %c0_i32_68 = arith.constant 0 : i32
    %c0_i32_69 = arith.constant 0 : i32
    %55 = arith.subi %54, %c0_i32_69 : i32
    %56 = arith.addi %c0_i32_69, %55 : i32
    %c1_i32_70 = arith.constant 1 : i32
    scf.for %arg8 = %c0_i32_69 to %56 step %c1_i32_70  : i32 {
      %184 = arith.muli %arg8, %c1_i32_67 : i32
      %185 = arith.addi %c0_i32_68, %184 : i32
      %c0_i32_148 = arith.constant 0 : i32
      %c0_i32_149 = arith.constant 0 : i32
      %c0_i32_150 = arith.constant 0 : i32
      %186 = tpu.memref_slice %arg3[%c0_i32_149, %c0_i32_150] : memref<256x128xf32, #tpu.memory_space<any>> -> memref<1x128xf32, #tpu.memory_space<any>>
      %c0_i32_151 = arith.constant 0 : i32
      %c0_i32_152 = arith.constant 0 : i32
      %187 = tpu.memref_slice %arg6[%c0_i32_151, %c0_i32_152] : memref<1024x128xf32, #tpu.memory_space<vmem>> -> memref<1x128xf32, #tpu.memory_space<vmem>>
      %188 = tpu.memref_slice %arg7[%c0_i32_148] : memref<8x!tpu.dma_semaphore, #tpu.memory_space<semaphore_mem>> -> memref<1x!tpu.dma_semaphore, #tpu.memory_space<semaphore_mem>>
      %189 = tpu.memref_squeeze %188 : memref<1x!tpu.dma_semaphore, #tpu.memory_space<semaphore_mem>> -> memref<!tpu.dma_semaphore, #tpu.memory_space<semaphore_mem>>
      tpu.wait_dma2 semaphore(%189 : memref<!tpu.dma_semaphore, #tpu.memory_space<semaphore_mem>>) src(%186 : memref<1x128xf32, #tpu.memory_space<any>>) dst(%187 : memref<1x128xf32, #tpu.memory_space<vmem>>)
    }
    %c0_i32_71 = arith.constant 0 : i32
    %57 = arith.subi %2, %c0_i32_71 : i32
    %c1_i32_72 = arith.constant 1 : i32
    %c1_i32_73 = arith.constant 1 : i32
    %58 = arith.subi %c1_i32_72, %c1_i32_73 : i32
    %59 = arith.addi %57, %58 : i32
    %c1_i32_74 = arith.constant 1 : i32
    %60 = arith.divsi %59, %c1_i32_74 : i32
    %c1_i32_75 = arith.constant 1 : i32
    %c0_i32_76 = arith.constant 0 : i32
    %c0_i32_77 = arith.constant 0 : i32
    %61 = arith.subi %60, %c0_i32_77 : i32
    %62 = arith.addi %c0_i32_77, %61 : i32
    %c1_i32_78 = arith.constant 1 : i32
    scf.for %arg8 = %c0_i32_77 to %62 step %c1_i32_78  : i32 {
      %184 = arith.muli %arg8, %c1_i32_75 : i32
      %185 = arith.addi %c0_i32_76, %184 : i32
      %c1_i32_148 = arith.constant 1 : i32
      %c0_i32_149 = arith.constant 0 : i32
      %c0_i32_150 = arith.constant 0 : i32
      %186 = tpu.memref_slice %arg3[%c0_i32_149, %c0_i32_150] : memref<256x128xf32, #tpu.memory_space<any>> -> memref<1x128xf32, #tpu.memory_space<any>>
      %c0_i32_151 = arith.constant 0 : i32
      %c0_i32_152 = arith.constant 0 : i32
      %187 = tpu.memref_slice %arg6[%c0_i32_151, %c0_i32_152] : memref<1024x128xf32, #tpu.memory_space<vmem>> -> memref<1x128xf32, #tpu.memory_space<vmem>>
      %188 = tpu.memref_slice %arg7[%c1_i32_148] : memref<8x!tpu.dma_semaphore, #tpu.memory_space<semaphore_mem>> -> memref<1x!tpu.dma_semaphore, #tpu.memory_space<semaphore_mem>>
      %189 = tpu.memref_squeeze %188 : memref<1x!tpu.dma_semaphore, #tpu.memory_space<semaphore_mem>> -> memref<!tpu.dma_semaphore, #tpu.memory_space<semaphore_mem>>
      tpu.wait_dma2 semaphore(%189 : memref<!tpu.dma_semaphore, #tpu.memory_space<semaphore_mem>>) src(%186 : memref<1x128xf32, #tpu.memory_space<any>>) dst(%187 : memref<1x128xf32, #tpu.memory_space<vmem>>)
    }
    %c0_i32_79 = arith.constant 0 : i32
    %63 = arith.subi %2, %c0_i32_79 : i32
    %c1_i32_80 = arith.constant 1 : i32
    %c1_i32_81 = arith.constant 1 : i32
    %64 = arith.subi %c1_i32_80, %c1_i32_81 : i32
    %65 = arith.addi %63, %64 : i32
    %c1_i32_82 = arith.constant 1 : i32
    %66 = arith.divsi %65, %c1_i32_82 : i32
    %c1_i32_83 = arith.constant 1 : i32
    %c0_i32_84 = arith.constant 0 : i32
    %c0_i32_85 = arith.constant 0 : i32
    %67 = arith.subi %66, %c0_i32_85 : i32
    %68 = arith.addi %c0_i32_85, %67 : i32
    %c1_i32_86 = arith.constant 1 : i32
    scf.for %arg8 = %c0_i32_85 to %68 step %c1_i32_86  : i32 {
      %184 = arith.muli %arg8, %c1_i32_83 : i32
      %185 = arith.addi %c0_i32_84, %184 : i32
      %c2_i32_148 = arith.constant 2 : i32
      %c0_i32_149 = arith.constant 0 : i32
      %c0_i32_150 = arith.constant 0 : i32
      %186 = tpu.memref_slice %arg3[%c0_i32_149, %c0_i32_150] : memref<256x128xf32, #tpu.memory_space<any>> -> memref<1x128xf32, #tpu.memory_space<any>>
      %c0_i32_151 = arith.constant 0 : i32
      %c0_i32_152 = arith.constant 0 : i32
      %187 = tpu.memref_slice %arg6[%c0_i32_151, %c0_i32_152] : memref<1024x128xf32, #tpu.memory_space<vmem>> -> memref<1x128xf32, #tpu.memory_space<vmem>>
      %188 = tpu.memref_slice %arg7[%c2_i32_148] : memref<8x!tpu.dma_semaphore, #tpu.memory_space<semaphore_mem>> -> memref<1x!tpu.dma_semaphore, #tpu.memory_space<semaphore_mem>>
      %189 = tpu.memref_squeeze %188 : memref<1x!tpu.dma_semaphore, #tpu.memory_space<semaphore_mem>> -> memref<!tpu.dma_semaphore, #tpu.memory_space<semaphore_mem>>
      tpu.wait_dma2 semaphore(%189 : memref<!tpu.dma_semaphore, #tpu.memory_space<semaphore_mem>>) src(%186 : memref<1x128xf32, #tpu.memory_space<any>>) dst(%187 : memref<1x128xf32, #tpu.memory_space<vmem>>)
    }
    %c0_i32_87 = arith.constant 0 : i32
    %69 = arith.subi %2, %c0_i32_87 : i32
    %c1_i32_88 = arith.constant 1 : i32
    %c1_i32_89 = arith.constant 1 : i32
    %70 = arith.subi %c1_i32_88, %c1_i32_89 : i32
    %71 = arith.addi %69, %70 : i32
    %c1_i32_90 = arith.constant 1 : i32
    %72 = arith.divsi %71, %c1_i32_90 : i32
    %c1_i32_91 = arith.constant 1 : i32
    %c0_i32_92 = arith.constant 0 : i32
    %c0_i32_93 = arith.constant 0 : i32
    %73 = arith.subi %72, %c0_i32_93 : i32
    %74 = arith.addi %c0_i32_93, %73 : i32
    %c1_i32_94 = arith.constant 1 : i32
    scf.for %arg8 = %c0_i32_93 to %74 step %c1_i32_94  : i32 {
      %184 = arith.muli %arg8, %c1_i32_91 : i32
      %185 = arith.addi %c0_i32_92, %184 : i32
      %c3_i32_148 = arith.constant 3 : i32
      %c0_i32_149 = arith.constant 0 : i32
      %c0_i32_150 = arith.constant 0 : i32
      %186 = tpu.memref_slice %arg3[%c0_i32_149, %c0_i32_150] : memref<256x128xf32, #tpu.memory_space<any>> -> memref<1x128xf32, #tpu.memory_space<any>>
      %c0_i32_151 = arith.constant 0 : i32
      %c0_i32_152 = arith.constant 0 : i32
      %187 = tpu.memref_slice %arg6[%c0_i32_151, %c0_i32_152] : memref<1024x128xf32, #tpu.memory_space<vmem>> -> memref<1x128xf32, #tpu.memory_space<vmem>>
      %188 = tpu.memref_slice %arg7[%c3_i32_148] : memref<8x!tpu.dma_semaphore, #tpu.memory_space<semaphore_mem>> -> memref<1x!tpu.dma_semaphore, #tpu.memory_space<semaphore_mem>>
      %189 = tpu.memref_squeeze %188 : memref<1x!tpu.dma_semaphore, #tpu.memory_space<semaphore_mem>> -> memref<!tpu.dma_semaphore, #tpu.memory_space<semaphore_mem>>
      tpu.wait_dma2 semaphore(%189 : memref<!tpu.dma_semaphore, #tpu.memory_space<semaphore_mem>>) src(%186 : memref<1x128xf32, #tpu.memory_space<any>>) dst(%187 : memref<1x128xf32, #tpu.memory_space<vmem>>)
    }
    %c0_i32_95 = arith.constant 0 : i32
    %75 = arith.subi %2, %c0_i32_95 : i32
    %c1_i32_96 = arith.constant 1 : i32
    %c1_i32_97 = arith.constant 1 : i32
    %76 = arith.subi %c1_i32_96, %c1_i32_97 : i32
    %77 = arith.addi %75, %76 : i32
    %c1_i32_98 = arith.constant 1 : i32
    %78 = arith.divsi %77, %c1_i32_98 : i32
    %c1_i32_99 = arith.constant 1 : i32
    %c0_i32_100 = arith.constant 0 : i32
    %c0_i32_101 = arith.constant 0 : i32
    %79 = arith.subi %78, %c0_i32_101 : i32
    %80 = arith.addi %c0_i32_101, %79 : i32
    %c1_i32_102 = arith.constant 1 : i32
    scf.for %arg8 = %c0_i32_101 to %80 step %c1_i32_102  : i32 {
      %184 = arith.muli %arg8, %c1_i32_99 : i32
      %185 = arith.addi %c0_i32_100, %184 : i32
      %c4_i32_148 = arith.constant 4 : i32
      %c0_i32_149 = arith.constant 0 : i32
      %c0_i32_150 = arith.constant 0 : i32
      %186 = tpu.memref_slice %arg3[%c0_i32_149, %c0_i32_150] : memref<256x128xf32, #tpu.memory_space<any>> -> memref<1x128xf32, #tpu.memory_space<any>>
      %c0_i32_151 = arith.constant 0 : i32
      %c0_i32_152 = arith.constant 0 : i32
      %187 = tpu.memref_slice %arg6[%c0_i32_151, %c0_i32_152] : memref<1024x128xf32, #tpu.memory_space<vmem>> -> memref<1x128xf32, #tpu.memory_space<vmem>>
      %188 = tpu.memref_slice %arg7[%c4_i32_148] : memref<8x!tpu.dma_semaphore, #tpu.memory_space<semaphore_mem>> -> memref<1x!tpu.dma_semaphore, #tpu.memory_space<semaphore_mem>>
      %189 = tpu.memref_squeeze %188 : memref<1x!tpu.dma_semaphore, #tpu.memory_space<semaphore_mem>> -> memref<!tpu.dma_semaphore, #tpu.memory_space<semaphore_mem>>
      tpu.wait_dma2 semaphore(%189 : memref<!tpu.dma_semaphore, #tpu.memory_space<semaphore_mem>>) src(%186 : memref<1x128xf32, #tpu.memory_space<any>>) dst(%187 : memref<1x128xf32, #tpu.memory_space<vmem>>)
    }
    %c0_i32_103 = arith.constant 0 : i32
    %81 = arith.subi %2, %c0_i32_103 : i32
    %c1_i32_104 = arith.constant 1 : i32
    %c1_i32_105 = arith.constant 1 : i32
    %82 = arith.subi %c1_i32_104, %c1_i32_105 : i32
    %83 = arith.addi %81, %82 : i32
    %c1_i32_106 = arith.constant 1 : i32
    %84 = arith.divsi %83, %c1_i32_106 : i32
    %c1_i32_107 = arith.constant 1 : i32
    %c0_i32_108 = arith.constant 0 : i32
    %c0_i32_109 = arith.constant 0 : i32
    %85 = arith.subi %84, %c0_i32_109 : i32
    %86 = arith.addi %c0_i32_109, %85 : i32
    %c1_i32_110 = arith.constant 1 : i32
    scf.for %arg8 = %c0_i32_109 to %86 step %c1_i32_110  : i32 {
      %184 = arith.muli %arg8, %c1_i32_107 : i32
      %185 = arith.addi %c0_i32_108, %184 : i32
      %c5_i32_148 = arith.constant 5 : i32
      %c0_i32_149 = arith.constant 0 : i32
      %c0_i32_150 = arith.constant 0 : i32
      %186 = tpu.memref_slice %arg3[%c0_i32_149, %c0_i32_150] : memref<256x128xf32, #tpu.memory_space<any>> -> memref<1x128xf32, #tpu.memory_space<any>>
      %c0_i32_151 = arith.constant 0 : i32
      %c0_i32_152 = arith.constant 0 : i32
      %187 = tpu.memref_slice %arg6[%c0_i32_151, %c0_i32_152] : memref<1024x128xf32, #tpu.memory_space<vmem>> -> memref<1x128xf32, #tpu.memory_space<vmem>>
      %188 = tpu.memref_slice %arg7[%c5_i32_148] : memref<8x!tpu.dma_semaphore, #tpu.memory_space<semaphore_mem>> -> memref<1x!tpu.dma_semaphore, #tpu.memory_space<semaphore_mem>>
      %189 = tpu.memref_squeeze %188 : memref<1x!tpu.dma_semaphore, #tpu.memory_space<semaphore_mem>> -> memref<!tpu.dma_semaphore, #tpu.memory_space<semaphore_mem>>
      tpu.wait_dma2 semaphore(%189 : memref<!tpu.dma_semaphore, #tpu.memory_space<semaphore_mem>>) src(%186 : memref<1x128xf32, #tpu.memory_space<any>>) dst(%187 : memref<1x128xf32, #tpu.memory_space<vmem>>)
    }
    %c0_i32_111 = arith.constant 0 : i32
    %87 = arith.subi %2, %c0_i32_111 : i32
    %c1_i32_112 = arith.constant 1 : i32
    %c1_i32_113 = arith.constant 1 : i32
    %88 = arith.subi %c1_i32_112, %c1_i32_113 : i32
    %89 = arith.addi %87, %88 : i32
    %c1_i32_114 = arith.constant 1 : i32
    %90 = arith.divsi %89, %c1_i32_114 : i32
    %c1_i32_115 = arith.constant 1 : i32
    %c0_i32_116 = arith.constant 0 : i32
    %c0_i32_117 = arith.constant 0 : i32
    %91 = arith.subi %90, %c0_i32_117 : i32
    %92 = arith.addi %c0_i32_117, %91 : i32
    %c1_i32_118 = arith.constant 1 : i32
    scf.for %arg8 = %c0_i32_117 to %92 step %c1_i32_118  : i32 {
      %184 = arith.muli %arg8, %c1_i32_115 : i32
      %185 = arith.addi %c0_i32_116, %184 : i32
      %c6_i32_148 = arith.constant 6 : i32
      %c0_i32_149 = arith.constant 0 : i32
      %c0_i32_150 = arith.constant 0 : i32
      %186 = tpu.memref_slice %arg3[%c0_i32_149, %c0_i32_150] : memref<256x128xf32, #tpu.memory_space<any>> -> memref<1x128xf32, #tpu.memory_space<any>>
      %c0_i32_151 = arith.constant 0 : i32
      %c0_i32_152 = arith.constant 0 : i32
      %187 = tpu.memref_slice %arg6[%c0_i32_151, %c0_i32_152] : memref<1024x128xf32, #tpu.memory_space<vmem>> -> memref<1x128xf32, #tpu.memory_space<vmem>>
      %188 = tpu.memref_slice %arg7[%c6_i32_148] : memref<8x!tpu.dma_semaphore, #tpu.memory_space<semaphore_mem>> -> memref<1x!tpu.dma_semaphore, #tpu.memory_space<semaphore_mem>>
      %189 = tpu.memref_squeeze %188 : memref<1x!tpu.dma_semaphore, #tpu.memory_space<semaphore_mem>> -> memref<!tpu.dma_semaphore, #tpu.memory_space<semaphore_mem>>
      tpu.wait_dma2 semaphore(%189 : memref<!tpu.dma_semaphore, #tpu.memory_space<semaphore_mem>>) src(%186 : memref<1x128xf32, #tpu.memory_space<any>>) dst(%187 : memref<1x128xf32, #tpu.memory_space<vmem>>)
    }
    %c0_i32_119 = arith.constant 0 : i32
    %93 = arith.subi %2, %c0_i32_119 : i32
    %c1_i32_120 = arith.constant 1 : i32
    %c1_i32_121 = arith.constant 1 : i32
    %94 = arith.subi %c1_i32_120, %c1_i32_121 : i32
    %95 = arith.addi %93, %94 : i32
    %c1_i32_122 = arith.constant 1 : i32
    %96 = arith.divsi %95, %c1_i32_122 : i32
    %c1_i32_123 = arith.constant 1 : i32
    %c0_i32_124 = arith.constant 0 : i32
    %c0_i32_125 = arith.constant 0 : i32
    %97 = arith.subi %96, %c0_i32_125 : i32
    %98 = arith.addi %c0_i32_125, %97 : i32
    %c1_i32_126 = arith.constant 1 : i32
    scf.for %arg8 = %c0_i32_125 to %98 step %c1_i32_126  : i32 {
      %184 = arith.muli %arg8, %c1_i32_123 : i32
      %185 = arith.addi %c0_i32_124, %184 : i32
      %c7_i32_148 = arith.constant 7 : i32
      %c0_i32_149 = arith.constant 0 : i32
      %c0_i32_150 = arith.constant 0 : i32
      %186 = tpu.memref_slice %arg3[%c0_i32_149, %c0_i32_150] : memref<256x128xf32, #tpu.memory_space<any>> -> memref<1x128xf32, #tpu.memory_space<any>>
      %c0_i32_151 = arith.constant 0 : i32
      %c0_i32_152 = arith.constant 0 : i32
      %187 = tpu.memref_slice %arg6[%c0_i32_151, %c0_i32_152] : memref<1024x128xf32, #tpu.memory_space<vmem>> -> memref<1x128xf32, #tpu.memory_space<vmem>>
      %188 = tpu.memref_slice %arg7[%c7_i32_148] : memref<8x!tpu.dma_semaphore, #tpu.memory_space<semaphore_mem>> -> memref<1x!tpu.dma_semaphore, #tpu.memory_space<semaphore_mem>>
      %189 = tpu.memref_squeeze %188 : memref<1x!tpu.dma_semaphore, #tpu.memory_space<semaphore_mem>> -> memref<!tpu.dma_semaphore, #tpu.memory_space<semaphore_mem>>
      tpu.wait_dma2 semaphore(%189 : memref<!tpu.dma_semaphore, #tpu.memory_space<semaphore_mem>>) src(%186 : memref<1x128xf32, #tpu.memory_space<any>>) dst(%187 : memref<1x128xf32, #tpu.memory_space<vmem>>)
    }
    %c0 = arith.constant 0 : index
    %c0_127 = arith.constant 0 : index
    %99 = memref.load %arg4[%c0, %c0_127] : memref<1x1xf32, #tpu.memory_space<smem>>
    %c0_128 = arith.constant 0 : index
    %c0_129 = arith.constant 0 : index
    %100 = vector.load %arg2[%c0_128, %c0_129] : memref<8x128xf32, #tpu.memory_space<vmem>>, vector<8x128xf32>
    %101 = arith.truncf %100 : vector<8x128xf32> to vector<8x128xbf16>
    %c0_130 = arith.constant 0 : index
    %c0_131 = arith.constant 0 : index
    %102 = vector.load %arg6[%c0_130, %c0_131] : memref<1024x128xf32, #tpu.memory_space<vmem>>, vector<1024x128xf32>
    %103 = arith.truncf %102 : vector<1024x128xf32> to vector<1024x128xbf16>
    %cst = arith.constant dense<0.000000e+00> : vector<8x1024xf32>
    %104 = tpu.matmul %101, %103, %cst {dimension_numbers = #tpu.dot_dimension_numbers<[1], [1], [0], [0], [0, 0, 1, 0], [], []>} : vector<8x128xbf16>, vector<1024x128xbf16>, vector<8x1024xf32> -> vector<8x1024xf32>
    %105 = tpu.iota {dimensions = array<i32: 0>} : vector<8x1xi32>
    %cst_132 = arith.constant 0.000000e+00 : f32
    %106 = vector.broadcast %cst_132 : f32 to vector<8x128xf32>
    %107 = vector.extract_strided_slice %104 {offsets = [0, 0], sizes = [8, 128], strides = [1, 1]} : vector<8x1024xf32> to vector<8x128xf32>
    %c0_i32_133 = arith.constant 0 : i32
    %108 = vector.broadcast %c0_i32_133 : i32 to vector<8x1xi32>
    %109 = arith.cmpi eq, %105, %108 : vector<8x1xi32>
    %cst_134 = arith.constant 0.000000e+00 : f32
    %110 = vector.shape_cast %109 : vector<8x1xi1> to vector<8x1xi1>
    %111 = vector.broadcast %110 : vector<8x1xi1> to vector<8x128xi1>
    %112 = vector.broadcast %cst_134 : f32 to vector<8x128xf32>
    %113 = arith.select %111, %107, %112 : vector<8x128xi1>, vector<8x128xf32>
    %114 = arith.addf %106, %113 : vector<8x128xf32>
    %115 = vector.extract_strided_slice %104 {offsets = [0, 128], sizes = [8, 128], strides = [1, 1]} : vector<8x1024xf32> to vector<8x128xf32>
    %c1_i32_135 = arith.constant 1 : i32
    %116 = vector.broadcast %c1_i32_135 : i32 to vector<8x1xi32>
    %117 = arith.cmpi eq, %105, %116 : vector<8x1xi32>
    %cst_136 = arith.constant 0.000000e+00 : f32
    %118 = vector.shape_cast %117 : vector<8x1xi1> to vector<8x1xi1>
    %119 = vector.broadcast %118 : vector<8x1xi1> to vector<8x128xi1>
    %120 = vector.broadcast %cst_136 : f32 to vector<8x128xf32>
    %121 = arith.select %119, %115, %120 : vector<8x128xi1>, vector<8x128xf32>
    %122 = arith.addf %114, %121 : vector<8x128xf32>
    %123 = vector.extract_strided_slice %104 {offsets = [0, 256], sizes = [8, 128], strides = [1, 1]} : vector<8x1024xf32> to vector<8x128xf32>
    %c2_i32 = arith.constant 2 : i32
    %124 = vector.broadcast %c2_i32 : i32 to vector<8x1xi32>
    %125 = arith.cmpi eq, %105, %124 : vector<8x1xi32>
    %cst_137 = arith.constant 0.000000e+00 : f32
    %126 = vector.shape_cast %125 : vector<8x1xi1> to vector<8x1xi1>
    %127 = vector.broadcast %126 : vector<8x1xi1> to vector<8x128xi1>
    %128 = vector.broadcast %cst_137 : f32 to vector<8x128xf32>
    %129 = arith.select %127, %123, %128 : vector<8x128xi1>, vector<8x128xf32>
    %130 = arith.addf %122, %129 : vector<8x128xf32>
    %131 = vector.extract_strided_slice %104 {offsets = [0, 384], sizes = [8, 128], strides = [1, 1]} : vector<8x1024xf32> to vector<8x128xf32>
    %c3_i32 = arith.constant 3 : i32
    %132 = vector.broadcast %c3_i32 : i32 to vector<8x1xi32>
    %133 = arith.cmpi eq, %105, %132 : vector<8x1xi32>
    %cst_138 = arith.constant 0.000000e+00 : f32
    %134 = vector.shape_cast %133 : vector<8x1xi1> to vector<8x1xi1>
    %135 = vector.broadcast %134 : vector<8x1xi1> to vector<8x128xi1>
    %136 = vector.broadcast %cst_138 : f32 to vector<8x128xf32>
    %137 = arith.select %135, %131, %136 : vector<8x128xi1>, vector<8x128xf32>
    %138 = arith.addf %130, %137 : vector<8x128xf32>
    %139 = vector.extract_strided_slice %104 {offsets = [0, 512], sizes = [8, 128], strides = [1, 1]} : vector<8x1024xf32> to vector<8x128xf32>
    %c4_i32 = arith.constant 4 : i32
    %140 = vector.broadcast %c4_i32 : i32 to vector<8x1xi32>
    %141 = arith.cmpi eq, %105, %140 : vector<8x1xi32>
    %cst_139 = arith.constant 0.000000e+00 : f32
    %142 = vector.shape_cast %141 : vector<8x1xi1> to vector<8x1xi1>
    %143 = vector.broadcast %142 : vector<8x1xi1> to vector<8x128xi1>
    %144 = vector.broadcast %cst_139 : f32 to vector<8x128xf32>
    %145 = arith.select %143, %139, %144 : vector<8x128xi1>, vector<8x128xf32>
    %146 = arith.addf %138, %145 : vector<8x128xf32>
    %147 = vector.extract_strided_slice %104 {offsets = [0, 640], sizes = [8, 128], strides = [1, 1]} : vector<8x1024xf32> to vector<8x128xf32>
    %c5_i32 = arith.constant 5 : i32
    %148 = vector.broadcast %c5_i32 : i32 to vector<8x1xi32>
    %149 = arith.cmpi eq, %105, %148 : vector<8x1xi32>
    %cst_140 = arith.constant 0.000000e+00 : f32
    %150 = vector.shape_cast %149 : vector<8x1xi1> to vector<8x1xi1>
    %151 = vector.broadcast %150 : vector<8x1xi1> to vector<8x128xi1>
    %152 = vector.broadcast %cst_140 : f32 to vector<8x128xf32>
    %153 = arith.select %151, %147, %152 : vector<8x128xi1>, vector<8x128xf32>
    %154 = arith.addf %146, %153 : vector<8x128xf32>
    %155 = vector.extract_strided_slice %104 {offsets = [0, 768], sizes = [8, 128], strides = [1, 1]} : vector<8x1024xf32> to vector<8x128xf32>
    %c6_i32 = arith.constant 6 : i32
    %156 = vector.broadcast %c6_i32 : i32 to vector<8x1xi32>
    %157 = arith.cmpi eq, %105, %156 : vector<8x1xi32>
    %cst_141 = arith.constant 0.000000e+00 : f32
    %158 = vector.shape_cast %157 : vector<8x1xi1> to vector<8x1xi1>
    %159 = vector.broadcast %158 : vector<8x1xi1> to vector<8x128xi1>
    %160 = vector.broadcast %cst_141 : f32 to vector<8x128xf32>
    %161 = arith.select %159, %155, %160 : vector<8x128xi1>, vector<8x128xf32>
    %162 = arith.addf %154, %161 : vector<8x128xf32>
    %163 = vector.extract_strided_slice %104 {offsets = [0, 896], sizes = [8, 128], strides = [1, 1]} : vector<8x1024xf32> to vector<8x128xf32>
    %c7_i32 = arith.constant 7 : i32
    %164 = vector.broadcast %c7_i32 : i32 to vector<8x1xi32>
    %165 = arith.cmpi eq, %105, %164 : vector<8x1xi32>
    %cst_142 = arith.constant 0.000000e+00 : f32
    %166 = vector.shape_cast %165 : vector<8x1xi1> to vector<8x1xi1>
    %167 = vector.broadcast %166 : vector<8x1xi1> to vector<8x128xi1>
    %168 = vector.broadcast %cst_142 : f32 to vector<8x128xf32>
    %169 = arith.select %167, %163, %168 : vector<8x128xi1>, vector<8x128xf32>
    %170 = arith.addf %162, %169 : vector<8x128xf32>
    %171 = tpu.iota {dimensions = array<i32: 1>} : vector<8x128xi32>
    %172 = vector.broadcast %0 : i32 to vector<8x128xi32>
    %173 = arith.addi %172, %171 : vector<8x128xi32>
    %cst_143 = arith.constant 14.2857141 : f32
    %174 = vector.broadcast %cst_143 : f32 to vector<8x128xf32>
    %175 = arith.mulf %170, %174 : vector<8x128xf32>
    %176 = math.exp %175 : vector<8x128xf32>
    %177 = vector.broadcast %99 : f32 to vector<8x128xf32>
    %178 = arith.mulf %176, %177 : vector<8x128xf32>
    %c16_i32_144 = arith.constant 16 : i32
    %179 = vector.broadcast %c16_i32_144 : i32 to vector<8x128xi32>
    %180 = arith.cmpi slt, %173, %179 : vector<8x128xi32>
    %cst_145 = arith.constant 0.000000e+00 : f32
    %181 = vector.broadcast %cst_145 : f32 to vector<8x128xf32>
    %182 = arith.select %180, %178, %181 : vector<8x128xi1>, vector<8x128xf32>
    %c0_146 = arith.constant 0 : index
    %c0_147 = arith.constant 0 : index
    %183 = vector.load %arg5[%c0_146, %c0_147] : memref<8x128xf32, #tpu.memory_space<vmem>>, vector<8x128xf32>
    tpu.vector_store %arg5[%c0_146, %c0_147], %182 {strides = array<i32>} : memref<8x128xf32, #tpu.memory_space<vmem>>, vector<8x128xf32>,
    return
  }
  func.func @transform_0(%arg0: i32, %arg1: memref<8x16xi32, #tpu.memory_space<smem>>) -> (i32, i32) {
    %c0_i32 = arith.constant 0 : i32
    %c0_i32_0 = arith.constant 0 : i32
    %c0_i32_1 = arith.constant 0 : i32
    return %c0_i32, %c0_i32_0 : i32, i32
  }
  func.func @transform_2(%arg0: i32, %arg1: memref<8x16xi32, #tpu.memory_space<smem>>) -> (i32, i32) {
    %c0_i32 = arith.constant 0 : i32
    %c0_i32_0 = arith.constant 0 : i32
    %c0_i32_1 = arith.constant 0 : i32
    return %c0_i32, %c0_i32_0 : i32, i32
  }
  func.func @transform_3(%arg0: i32, %arg1: memref<8x16xi32, #tpu.memory_space<smem>>) -> (i32, i32) {
    %c0_i32 = arith.constant 0 : i32
    %c0_i32_0 = arith.constant 0 : i32
    return %c0_i32, %arg0 : i32, i32
  }
}

</mosaic_0001>

<llo_original>
// kernel: tpu_custom_call.1
$region0: #{tpu_custom_call.1}
  #allocation0 [shape = 'u32[]', space=smem, size = 0x4, offset = 0x4, fixed_abs, tag = 'smem constant byte address 0x4 - core index']
  #allocation1 [shape = 'u32[144,128]{1,0:T(1,128)}', space=vmem, size = 0x12000, scoped, tag = 'internal scratch']
  #allocation2 [shape = 'f32[1024,128]{1,0:T(8,128)}', space=vmem, size = 0x80000, scoped, tag = 'scratch operand']
  #allocation3 [shape = 's32[8]{0}', space=sflag, size = 0x20, scoped, tag = 'scratch operand']
  #allocation4 [shape = 's32[1]{0}', space=sflag, size = 0x4, scoped, tag = 'scoped memory for tpu_custom_call.1']
  #allocation5 [shape = 'u8[4096]{0}', space=smem, size = 0x1000, scoped, tag = 'prefetched SMEM operand 0']
  #allocation6 [shape = 'f32[1,1]{1,0:T(1,128)S(6)}', space=smem, size = 0x200, scoped, tag = 'scoped memory for tpu_custom_call.1']
  #allocation11 [shape = 's32[]', space=sflag, size = 0x4, offset = 0, fixed_abs, tag = 'sflag constant byte address 0x0 - dummy sync flag']
  #allocation12 [shape = 's32[]', space=sflag, size = 0x4, offset = 0, fixed_abs, tag = 'sflag constant byte address 0x0 - dummy sync flag']
  #allocation13 [shape = 'u32[]', space=smem, size = 0x4, offset = 0x44, fixed_abs, tag = 'smem constant byte address 0x44 - assertion arg 0']
  #allocation14 [shape = 'u32[]', space=smem, size = 0x4, offset = 0x48, fixed_abs, tag = 'smem constant byte address 0x48 - assertion arg 1']
  #allocation15 [shape = 's32[]', space=sflag, size = 0x4, offset = 0, fixed_abs, tag = 'sflag constant byte address 0x0 - dummy sync flag']
  #allocation16 [shape = 's32[]', space=sflag, size = 0x4, offset = 0, fixed_abs, tag = 'sflag constant byte address 0x0 - dummy sync flag']
  #allocation17 [shape = 's32[]', space=sflag, size = 0x4, offset = 0, fixed_abs, tag = 'sflag constant byte address 0x0 - dummy sync flag']
  #allocation18 [shape = 's32[]', space=sflag, size = 0x4, offset = 0, fixed_abs, tag = 'sflag constant byte address 0x0 - dummy sync flag']
  #allocation19 [shape = 's32[]', space=sflag, size = 0x4, offset = 0, fixed_abs, tag = 'sflag constant byte address 0x0 - dummy sync flag']
  #allocation20 [shape = 's32[]', space=sflag, size = 0x4, offset = 0, fixed_abs, tag = 'sflag constant byte address 0x0 - dummy sync flag']
  #allocation21 [shape = 's32[]', space=sflag, size = 0x4, offset = 0, fixed_abs, tag = 'sflag constant byte address 0x0 - dummy sync flag']
  #allocation22 [shape = 's32[]', space=sflag, size = 0x4, offset = 0, fixed_abs, tag = 'sflag constant byte address 0x0 - dummy sync flag']
  #allocation23 [shape = 's32[]', space=sflag, size = 0x4, offset = 0, fixed_abs, tag = 'sflag constant byte address 0x0 - dummy sync flag']
  #allocation24 [shape = 's32[]', space=sflag, size = 0x4, offset = 0, fixed_abs, tag = 'sflag constant byte address 0x0 - dummy sync flag']
  #allocation25 [shape = 's32[]', space=sflag, size = 0x4, offset = 0, fixed_abs, tag = 'sflag constant byte address 0x0 - dummy sync flag']
  #allocation26 [shape = 's32[]', space=sflag, size = 0x4, offset = 0, fixed_abs, tag = 'sflag constant byte address 0x0 - dummy sync flag']
  #allocation27 [shape = 's32[]', space=sflag, size = 0x4, offset = 0, fixed_abs, tag = 'sflag constant byte address 0x0 - dummy sync flag']
  #allocation28 [shape = 's32[]', space=sflag, size = 0x4, offset = 0, fixed_abs, tag = 'sflag constant byte address 0x0 - dummy sync flag']
  %s0 = inlined_call_operand.hbm [shape: s32[8,16], index: 0, kind: input, shape index: {}]
  %s1 = inlined_call_operand.hbm [shape: f32[8,128], index: 1, kind: input, shape index: {}]
  %s2 = inlined_call_operand.hbm [shape: f32[256,128], index: 2, kind: input, shape index: {}]
  %s3 = inlined_call_operand.<no memory space> [shape: f32[1,1], index: 3, kind: input, shape index: {}]
  %s4 = inlined_call_operand.hbm [shape: f32[8,128], index: 4, kind: output, shape index: {}]
  %s5 = sld [smem:[#allocation0]]
  $region166: #{tpu_custom_call.1} parent=0
    _
  %s7 = ssub.s32 1, %s5
  %s8 = scalar_select 0, %s7, %s5
  %10 = dma.hbm_to_smem %s0, 128, [#allocation5], [#allocation4]
  %11 = sst [smem:[#allocation6]] %s3
  %12 = dma.done [#allocation4], 128
  %13 = sfence
  $region1: #{tpu_custom_call.1} parent=0
    #allocation7 [shape = 'u8[4096]{0}', space=vmem, size = 0x1000, scoped, tag = 'input window, operand 1, single buffered']
    #allocation8 [shape = 's32[1]{0}', space=sflag, size = 0x4, scoped, tag = 'scoped memory for tpu_custom_call.1']
    #allocation9 [shape = 's32[1]{0}', space=sflag, size = 0x4, scoped, tag = 'scoped memory for tpu_custom_call.1']
    #allocation10 [shape = 'u8[4096]{0}', space=vmem, size = 0x1000, scoped, tag = 'output window, operand 0, single buffered']
    %14 = vsyncpa [#allocation8], 0
    %15 = vsyncpa [#allocation9], 0
    // Predicated region
    $region2: #{tpu_custom_call.1} parent=1 // pred_check
      _
    $region3: #{tpu_custom_call.1} parent=1 // pred_check_branch
      %17 = sbr.rel (0) target = $region5
    $region4: #{tpu_custom_call.1} parent=1 // pred_region
      %s19 = ssub.s32 128, 128
      %20 = vsyncadd [#allocation8], %s19
      %s22 = sshll.u32 [#allocation7], 4
      %s23 = int_to_ptr.vmem [resolvable:$true] %s22
      %25 = dma.hbm_to_vmem [thread:$0]  %s1, 128, %s23, [#allocation8]
    $region5: #{tpu_custom_call.1} parent=1 // pred_fallthru
      _
    // Predicated region
    $region6: #{tpu_custom_call.1} parent=1 // pred_check
      _
    $region7: #{tpu_custom_call.1} parent=1 // pred_check_branch
      %27 = sbr.rel (0) target = $region9
    $region8: #{tpu_custom_call.1} parent=1 // pred_region
      _
    $region9: #{tpu_custom_call.1} parent=1 // pred_fallthru
      _
    // Predicated region
    $region10: #{tpu_custom_call.1} parent=1 // pred_check
      _
    $region11: #{tpu_custom_call.1} parent=1 // pred_check_branch
      %29 = sbr.rel (0) target = $region13
    $region12: #{tpu_custom_call.1} parent=1 // pred_region
      %30 = dma.done [#allocation8], 128
    $region13: #{tpu_custom_call.1} parent=1 // pred_fallthru
      _
    %s32 = smul.u32 0, 128
    %s33 = ssub.s32 16, %s32
    %p34 = scmp.lt.s32.totalorder %s33, 128
    %s35 = scalar_select %p34, %s33, 128
    // While loop
    $region14: #{tpu_custom_call.1} parent=1 // loop_pre_header
      _
    $region15: #{tpu_custom_call.1} parent=1 // loop_header
      %s37 = sphi 0, %s39
      %p38 = scmp.ge.s32.totalorder %s37, %s35
    $region16: #{tpu_custom_call.1} parent=1 // loop_header_branch
      %41 = sbr.rel (%p38) target = $region20
    $region17: #{tpu_custom_call.1} parent=1 // loop_body
      %s42 = sadd.s32 %s32, %s37
      %s43 = sld [smem:[#allocation5 + %s42]]
      %s44 = smul.addr %s43, 16
      %s45 = scalar_lea.hbm %s2, %s44
      %s46 = scalar_lea.vmem [#allocation2], %s37
      // Predicated region
      $region21: #{tpu_custom_call.1} parent=17 // pred_check
        _
      $region22: #{tpu_custom_call.1} parent=17 // pred_check_branch
        %48 = sbr.rel target = $region24
      $region23: #{tpu_custom_call.1} parent=17 // pred_region
        %49 = sst [smem:[#allocation13]] [#allocation12]
        %50 = sst [smem:[#allocation14]] [#allocation11]
      $region24: #{tpu_custom_call.1} parent=17 // pred_fallthru
        _
      %52 = shalt.err (0)
      %s54 = sshll.u32 %s46, 4
      %s55 = int_to_ptr.vmem [resolvable:$true] %s54
      %57 = dma.hbm_to_vmem [thread:$0]  %s45, 16, %s55, [#allocation3]
    $region18: #{tpu_custom_call.1} parent=1 // loop_footer
      %s39 = sadd.s32 %s37, 1
    $region19: #{tpu_custom_call.1} parent=1 // loop_footer_branch
      %36 = sbr.rel target = $region15
    $region20: #{tpu_custom_call.1} parent=1 // loop_exit
      _
    // While loop
    $region25: #{tpu_custom_call.1} parent=1 // loop_pre_header
      _
    $region26: #{tpu_custom_call.1} parent=1 // loop_header
      %s59 = sphi 0, %s61
      %p60 = scmp.ge.s32.totalorder %s59, %s35
    $region27: #{tpu_custom_call.1} parent=1 // loop_header_branch
      %63 = sbr.rel (%p60) target = $region31
    $region28: #{tpu_custom_call.1} parent=1 // loop_body
      %s64 = sadd.s32 %s32, %s59
      %s65 = sshra.s32 %s64, 7
      %s66 = sand.u32 %s64, 127
      %s67 = sadd.s32 %s65, 1
      %s68 = smul.u32 %s67, 128
      %s69 = sshra.s32 %s64, 7
      %s70 = sand.u32 %s64, 127
      %s71 = sadd.s32 %s68, %s70
      %s72 = sld [smem:[#allocation5 + %s71]]
      %s73 = sadd.s32 %s59, 128
      %s74 = smul.addr %s72, 16
      %s75 = scalar_lea.hbm %s2, %s74
      %s76 = scalar_lea.vmem [#allocation2], %s73
      %s77 = scalar_lea.sflag [#allocation3], 1
      // Predicated region
      $region32: #{tpu_custom_call.1} parent=28 // pred_check
        _
      $region33: #{tpu_custom_call.1} parent=28 // pred_check_branch
        %79 = sbr.rel target = $region35
      $region34: #{tpu_custom_call.1} parent=28 // pred_region
        %80 = sst [smem:[#allocation13]] [#allocation16]
        %81 = sst [smem:[#allocation14]] [#allocation15]
      $region35: #{tpu_custom_call.1} parent=28 // pred_fallthru
        _
      %83 = shalt.err (0)
      %s85 = sshll.u32 %s76, 4
      %s86 = int_to_ptr.vmem [resolvable:$true] %s85
      %88 = dma.hbm_to_vmem [thread:$0]  %s75, 16, %s86, %s77
    $region29: #{tpu_custom_call.1} parent=1 // loop_footer
      %s61 = sadd.s32 %s59, 1
    $region30: #{tpu_custom_call.1} parent=1 // loop_footer_branch
      %58 = sbr.rel target = $region26
    $region31: #{tpu_custom_call.1} parent=1 // loop_exit
      _
    // While loop
    $region36: #{tpu_custom_call.1} parent=1 // loop_pre_header
      _
    $region37: #{tpu_custom_call.1} parent=1 // loop_header
      %s90 = sphi 0, %s92
      %p91 = scmp.ge.s32.totalorder %s90, %s35
    $region38: #{tpu_custom_call.1} parent=1 // loop_header_branch
      %94 = sbr.rel (%p91) target = $region42
    $region39: #{tpu_custom_call.1} parent=1 // loop_body
      %s95 = sadd.s32 %s32, %s90
      %s96 = sshra.s32 %s95, 7
      %s97 = sand.u32 %s95, 127
      %s98 = sadd.s32 %s96, 2
      %s99 = smul.u32 %s98, 128
      %s100 = sshra.s32 %s95, 7
      %s101 = sand.u32 %s95, 127
      %s102 = sadd.s32 %s99, %s101
      %s103 = sld [smem:[#allocation5 + %s102]]
      %s104 = sadd.s32 %s90, 256
      %s105 = smul.addr %s103, 16
      %s106 = scalar_lea.hbm %s2, %s105
      %s107 = scalar_lea.vmem [#allocation2], %s104
      %s108 = scalar_lea.sflag [#allocation3], 2
      // Predicated region
      $region43: #{tpu_custom_call.1} parent=39 // pred_check
        _
      $region44: #{tpu_custom_call.1} parent=39 // pred_check_branch
        %110 = sbr.rel target = $region46
      $region45: #{tpu_custom_call.1} parent=39 // pred_region
        %111 = sst [smem:[#allocation13]] [#allocation18]
        %112 = sst [smem:[#allocation14]] [#allocation17]
      $region46: #{tpu_custom_call.1} parent=39 // pred_fallthru
        _
      %114 = shalt.err (0)
      %s116 = sshll.u32 %s107, 4
      %s117 = int_to_ptr.vmem [resolvable:$true] %s116
      %119 = dma.hbm_to_vmem [thread:$0]  %s106, 16, %s117, %s108
    $region40: #{tpu_custom_call.1} parent=1 // loop_footer
      %s92 = sadd.s32 %s90, 1
    $region41: #{tpu_custom_call.1} parent=1 // loop_footer_branch
      %89 = sbr.rel target = $region37
    $region42: #{tpu_custom_call.1} parent=1 // loop_exit
      _
    // While loop
    $region47: #{tpu_custom_call.1} parent=1 // loop_pre_header
      _
    $region48: #{tpu_custom_call.1} parent=1 // loop_header
      %s121 = sphi 0, %s123
      %p122 = scmp.ge.s32.totalorder %s121, %s35
    $region49: #{tpu_custom_call.1} parent=1 // loop_header_branch
      %125 = sbr.rel (%p122) target = $region53
    $region50: #{tpu_custom_call.1} parent=1 // loop_body
      %s126 = sadd.s32 %s32, %s121
      %s127 = sshra.s32 %s126, 7
      %s128 = sand.u32 %s126, 127
      %s129 = sadd.s32 %s127, 3
      %s130 = smul.u32 %s129, 128
      %s131 = sshra.s32 %s126, 7
      %s132 = sand.u32 %s126, 127
      %s133 = sadd.s32 %s130, %s132
      %s134 = sld [smem:[#allocation5 + %s133]]
      %s135 = sadd.s32 %s121, 384
      %s136 = smul.addr %s134, 16
      %s137 = scalar_lea.hbm %s2, %s136
      %s138 = scalar_lea.vmem [#allocation2], %s135
      %s139 = scalar_lea.sflag [#allocation3], 3
      // Predicated region
      $region54: #{tpu_custom_call.1} parent=50 // pred_check
        _
      $region55: #{tpu_custom_call.1} parent=50 // pred_check_branch
        %141 = sbr.rel target = $region57
      $region56: #{tpu_custom_call.1} parent=50 // pred_region
        %142 = sst [smem:[#allocation13]] [#allocation20]
        %143 = sst [smem:[#allocation14]] [#allocation19]
      $region57: #{tpu_custom_call.1} parent=50 // pred_fallthru
        _
      %145 = shalt.err (0)
      %s147 = sshll.u32 %s138, 4
      %s148 = int_to_ptr.vmem [resolvable:$true] %s147
      %150 = dma.hbm_to_vmem [thread:$0]  %s137, 16, %s148, %s139
    $region51: #{tpu_custom_call.1} parent=1 // loop_footer
      %s123 = sadd.s32 %s121, 1
    $region52: #{tpu_custom_call.1} parent=1 // loop_footer_branch
      %120 = sbr.rel target = $region48
    $region53: #{tpu_custom_call.1} parent=1 // loop_exit
      _
    // While loop
    $region58: #{tpu_custom_call.1} parent=1 // loop_pre_header
      _
    $region59: #{tpu_custom_call.1} parent=1 // loop_header
      %s152 = sphi 0, %s154
      %p153 = scmp.ge.s32.totalorder %s152, %s35
    $region60: #{tpu_custom_call.1} parent=1 // loop_header_branch
      %156 = sbr.rel (%p153) target = $region64
    $region61: #{tpu_custom_call.1} parent=1 // loop_body
      %s157 = sadd.s32 %s32, %s152
      %s158 = sshra.s32 %s157, 7
      %s159 = sand.u32 %s157, 127
      %s160 = sadd.s32 %s158, 4
      %s161 = smul.u32 %s160, 128
      %s162 = sshra.s32 %s157, 7
      %s163 = sand.u32 %s157, 127
      %s164 = sadd.s32 %s161, %s163
      %s165 = sld [smem:[#allocation5 + %s164]]
      %s166 = sadd.s32 %s152, 512
      %s167 = smul.addr %s165, 16
      %s168 = scalar_lea.hbm %s2, %s167
      %s169 = scalar_lea.vmem [#allocation2], %s166
      %s170 = scalar_lea.sflag [#allocation3], 4
      // Predicated region
      $region65: #{tpu_custom_call.1} parent=61 // pred_check
        _
      $region66: #{tpu_custom_call.1} parent=61 // pred_check_branch
        %172 = sbr.rel target = $region68
      $region67: #{tpu_custom_call.1} parent=61 // pred_region
        %173 = sst [smem:[#allocation13]] [#allocation22]
        %174 = sst [smem:[#allocation14]] [#allocation21]
      $region68: #{tpu_custom_call.1} parent=61 // pred_fallthru
        _
      %176 = shalt.err (0)
      %s178 = sshll.u32 %s169, 4
      %s179 = int_to_ptr.vmem [resolvable:$true] %s178
      %181 = dma.hbm_to_vmem [thread:$0]  %s168, 16, %s179, %s170
    $region62: #{tpu_custom_call.1} parent=1 // loop_footer
      %s154 = sadd.s32 %s152, 1
    $region63: #{tpu_custom_call.1} parent=1 // loop_footer_branch
      %151 = sbr.rel target = $region59
    $region64: #{tpu_custom_call.1} parent=1 // loop_exit
      _
    // While loop
    $region69: #{tpu_custom_call.1} parent=1 // loop_pre_header
      _
    $region70: #{tpu_custom_call.1} parent=1 // loop_header
      %s183 = sphi 0, %s185
      %p184 = scmp.ge.s32.totalorder %s183, %s35
    $region71: #{tpu_custom_call.1} parent=1 // loop_header_branch
      %187 = sbr.rel (%p184) target = $region75
    $region72: #{tpu_custom_call.1} parent=1 // loop_body
      %s188 = sadd.s32 %s32, %s183
      %s189 = sshra.s32 %s188, 7
      %s190 = sand.u32 %s188, 127
      %s191 = sadd.s32 %s189, 5
      %s192 = smul.u32 %s191, 128
      %s193 = sshra.s32 %s188, 7
      %s194 = sand.u32 %s188, 127
      %s195 = sadd.s32 %s192, %s194
      %s196 = sld [smem:[#allocation5 + %s195]]
      %s197 = sadd.s32 %s183, 640
      %s198 = smul.addr %s196, 16
      %s199 = scalar_lea.hbm %s2, %s198
      %s200 = scalar_lea.vmem [#allocation2], %s197
      %s201 = scalar_lea.sflag [#allocation3], 5
      // Predicated region
      $region76: #{tpu_custom_call.1} parent=72 // pred_check
        _
      $region77: #{tpu_custom_call.1} parent=72 // pred_check_branch
        %203 = sbr.rel target = $region79
      $region78: #{tpu_custom_call.1} parent=72 // pred_region
        %204 = sst [smem:[#allocation13]] [#allocation24]
        %205 = sst [smem:[#allocation14]] [#allocation23]
      $region79: #{tpu_custom_call.1} parent=72 // pred_fallthru
        _
      %207 = shalt.err (0)
      %s209 = sshll.u32 %s200, 4
      %s210 = int_to_ptr.vmem [resolvable:$true] %s209
      %212 = dma.hbm_to_vmem [thread:$0]  %s199, 16, %s210, %s201
    $region73: #{tpu_custom_call.1} parent=1 // loop_footer
      %s185 = sadd.s32 %s183, 1
    $region74: #{tpu_custom_call.1} parent=1 // loop_footer_branch
      %182 = sbr.rel target = $region70
    $region75: #{tpu_custom_call.1} parent=1 // loop_exit
      _
    // While loop
    $region80: #{tpu_custom_call.1} parent=1 // loop_pre_header
      _
    $region81: #{tpu_custom_call.1} parent=1 // loop_header
      %s214 = sphi 0, %s216
      %p215 = scmp.ge.s32.totalorder %s214, %s35
    $region82: #{tpu_custom_call.1} parent=1 // loop_header_branch
      %218 = sbr.rel (%p215) target = $region86
    $region83: #{tpu_custom_call.1} parent=1 // loop_body
      %s219 = sadd.s32 %s32, %s214
      %s220 = sshra.s32 %s219, 7
      %s221 = sand.u32 %s219, 127
      %s222 = sadd.s32 %s220, 6
      %s223 = smul.u32 %s222, 128
      %s224 = sshra.s32 %s219, 7
      %s225 = sand.u32 %s219, 127
      %s226 = sadd.s32 %s223, %s225
      %s227 = sld [smem:[#allocation5 + %s226]]
      %s228 = sadd.s32 %s214, 768
      %s229 = smul.addr %s227, 16
      %s230 = scalar_lea.hbm %s2, %s229
      %s231 = scalar_lea.vmem [#allocation2], %s228
      %s232 = scalar_lea.sflag [#allocation3], 6
      // Predicated region
      $region87: #{tpu_custom_call.1} parent=83 // pred_check
        _
      $region88: #{tpu_custom_call.1} parent=83 // pred_check_branch
        %234 = sbr.rel target = $region90
      $region89: #{tpu_custom_call.1} parent=83 // pred_region
        %235 = sst [smem:[#allocation13]] [#allocation26]
        %236 = sst [smem:[#allocation14]] [#allocation25]
      $region90: #{tpu_custom_call.1} parent=83 // pred_fallthru
        _
      %238 = shalt.err (0)
      %s240 = sshll.u32 %s231, 4
      %s241 = int_to_ptr.vmem [resolvable:$true] %s240
      %243 = dma.hbm_to_vmem [thread:$0]  %s230, 16, %s241, %s232
    $region84: #{tpu_custom_call.1} parent=1 // loop_footer
      %s216 = sadd.s32 %s214, 1
    $region85: #{tpu_custom_call.1} parent=1 // loop_footer_branch
      %213 = sbr.rel target = $region81
    $region86: #{tpu_custom_call.1} parent=1 // loop_exit
      _
    // While loop
    $region91: #{tpu_custom_call.1} parent=1 // loop_pre_header
      _
    $region92: #{tpu_custom_call.1} parent=1 // loop_header
      %s245 = sphi 0, %s247
      %p246 = scmp.ge.s32.totalorder %s245, %s35
    $region93: #{tpu_custom_call.1} parent=1 // loop_header_branch
      %249 = sbr.rel (%p246) target = $region97
    $region94: #{tpu_custom_call.1} parent=1 // loop_body
      %s250 = sadd.s32 %s32, %s245
      %s251 = sshra.s32 %s250, 7
      %s252 = sand.u32 %s250, 127
      %s253 = sadd.s32 %s251, 7
      %s254 = smul.u32 %s253, 128
      %s255 = sshra.s32 %s250, 7
      %s256 = sand.u32 %s250, 127
      %s257 = sadd.s32 %s254, %s256
      %s258 = sld [smem:[#allocation5 + %s257]]
      %s259 = sadd.s32 %s245, 896
      %s260 = smul.addr %s258, 16
      %s261 = scalar_lea.hbm %s2, %s260
      %s262 = scalar_lea.vmem [#allocation2], %s259
      %s263 = scalar_lea.sflag [#allocation3], 7
      // Predicated region
      $region98: #{tpu_custom_call.1} parent=94 // pred_check
        _
      $region99: #{tpu_custom_call.1} parent=94 // pred_check_branch
        %265 = sbr.rel target = $region101
      $region100: #{tpu_custom_call.1} parent=94 // pred_region
        %266 = sst [smem:[#allocation13]] [#allocation28]
        %267 = sst [smem:[#allocation14]] [#allocation27]
      $region101: #{tpu_custom_call.1} parent=94 // pred_fallthru
        _
      %269 = shalt.err (0)
      %s271 = sshll.u32 %s262, 4
      %s272 = int_to_ptr.vmem [resolvable:$true] %s271
      %274 = dma.hbm_to_vmem [thread:$0]  %s261, 16, %s272, %s263
    $region95: #{tpu_custom_call.1} parent=1 // loop_footer
      %s247 = sadd.s32 %s245, 1
    $region96: #{tpu_custom_call.1} parent=1 // loop_footer_branch
      %244 = sbr.rel target = $region92
    $region97: #{tpu_custom_call.1} parent=1 // loop_exit
      _
    // While loop
    $region102: #{tpu_custom_call.1} parent=1 // loop_pre_header
      _
    $region103: #{tpu_custom_call.1} parent=1 // loop_header
      %s276 = sphi 0, %s278
      %p277 = scmp.ge.s32.totalorder %s276, %s35
    $region104: #{tpu_custom_call.1} parent=1 // loop_header_branch
      %280 = sbr.rel (%p277) target = $region108
    $region105: #{tpu_custom_call.1} parent=1 // loop_body
      %s281 = smul.u32 1, 1
      %s282 = sshll.u32 %s281, 4
      %283 = dma.done [#allocation3], %s282
    $region106: #{tpu_custom_call.1} parent=1 // loop_footer
      %s278 = sadd.s32 %s276, 1
    $region107: #{tpu_custom_call.1} parent=1 // loop_footer_branch
      %275 = sbr.rel target = $region103
    $region108: #{tpu_custom_call.1} parent=1 // loop_exit
      _
    // While loop
    $region109: #{tpu_custom_call.1} parent=1 // loop_pre_header
      _
    $region110: #{tpu_custom_call.1} parent=1 // loop_header
      %s285 = sphi 0, %s287
      %p286 = scmp.ge.s32.totalorder %s285, %s35
    $region111: #{tpu_custom_call.1} parent=1 // loop_header_branch
      %289 = sbr.rel (%p286) target = $region115
    $region112: #{tpu_custom_call.1} parent=1 // loop_body
      %s290 = scalar_lea.sflag [#allocation3], 1
      %s291 = smul.u32 1, 1
      %s292 = sshll.u32 %s291, 4
      %293 = dma.done %s290, %s292
    $region113: #{tpu_custom_call.1} parent=1 // loop_footer
      %s287 = sadd.s32 %s285, 1
    $region114: #{tpu_custom_call.1} parent=1 // loop_footer_branch
      %284 = sbr.rel target = $region110
    $region115: #{tpu_custom_call.1} parent=1 // loop_exit
      _
    // While loop
    $region116: #{tpu_custom_call.1} parent=1 // loop_pre_header
      _
    $region117: #{tpu_custom_call.1} parent=1 // loop_header
      %s295 = sphi 0, %s297
      %p296 = scmp.ge.s32.totalorder %s295, %s35
    $region118: #{tpu_custom_call.1} parent=1 // loop_header_branch
      %299 = sbr.rel (%p296) target = $region122
    $region119: #{tpu_custom_call.1} parent=1 // loop_body
      %s300 = scalar_lea.sflag [#allocation3], 2
      %s301 = smul.u32 1, 1
      %s302 = sshll.u32 %s301, 4
      %303 = dma.done %s300, %s302
    $region120: #{tpu_custom_call.1} parent=1 // loop_footer
      %s297 = sadd.s32 %s295, 1
    $region121: #{tpu_custom_call.1} parent=1 // loop_footer_branch
      %294 = sbr.rel target = $region117
    $region122: #{tpu_custom_call.1} parent=1 // loop_exit
      _
    // While loop
    $region123: #{tpu_custom_call.1} parent=1 // loop_pre_header
      _
    $region124: #{tpu_custom_call.1} parent=1 // loop_header
      %s305 = sphi 0, %s307
      %p306 = scmp.ge.s32.totalorder %s305, %s35
    $region125: #{tpu_custom_call.1} parent=1 // loop_header_branch
      %309 = sbr.rel (%p306) target = $region129
    $region126: #{tpu_custom_call.1} parent=1 // loop_body
      %s310 = scalar_lea.sflag [#allocation3], 3
      %s311 = smul.u32 1, 1
      %s312 = sshll.u32 %s311, 4
      %313 = dma.done %s310, %s312
    $region127: #{tpu_custom_call.1} parent=1 // loop_footer
      %s307 = sadd.s32 %s305, 1
    $region128: #{tpu_custom_call.1} parent=1 // loop_footer_branch
      %304 = sbr.rel target = $region124
    $region129: #{tpu_custom_call.1} parent=1 // loop_exit
      _
    // While loop
    $region130: #{tpu_custom_call.1} parent=1 // loop_pre_header
      _
    $region131: #{tpu_custom_call.1} parent=1 // loop_header
      %s315 = sphi 0, %s317
      %p316 = scmp.ge.s32.totalorder %s315, %s35
    $region132: #{tpu_custom_call.1} parent=1 // loop_header_branch
      %319 = sbr.rel (%p316) target = $region136
    $region133: #{tpu_custom_call.1} parent=1 // loop_body
      %s320 = scalar_lea.sflag [#allocation3], 4
      %s321 = smul.u32 1, 1
      %s322 = sshll.u32 %s321, 4
      %323 = dma.done %s320, %s322
    $region134: #{tpu_custom_call.1} parent=1 // loop_footer
      %s317 = sadd.s32 %s315, 1
    $region135: #{tpu_custom_call.1} parent=1 // loop_footer_branch
      %314 = sbr.rel target = $region131
    $region136: #{tpu_custom_call.1} parent=1 // loop_exit
      _
    // While loop
    $region137: #{tpu_custom_call.1} parent=1 // loop_pre_header
      _
    $region138: #{tpu_custom_call.1} parent=1 // loop_header
      %s325 = sphi 0, %s327
      %p326 = scmp.ge.s32.totalorder %s325, %s35
    $region139: #{tpu_custom_call.1} parent=1 // loop_header_branch
      %329 = sbr.rel (%p326) target = $region143
    $region140: #{tpu_custom_call.1} parent=1 // loop_body
      %s330 = scalar_lea.sflag [#allocation3], 5
      %s331 = smul.u32 1, 1
      %s332 = sshll.u32 %s331, 4
      %333 = dma.done %s330, %s332
    $region141: #{tpu_custom_call.1} parent=1 // loop_footer
      %s327 = sadd.s32 %s325, 1
    $region142: #{tpu_custom_call.1} parent=1 // loop_footer_branch
      %324 = sbr.rel target = $region138
    $region143: #{tpu_custom_call.1} parent=1 // loop_exit
      _
    // While loop
    $region144: #{tpu_custom_call.1} parent=1 // loop_pre_header
      _
    $region145: #{tpu_custom_call.1} parent=1 // loop_header
      %s335 = sphi 0, %s337
      %p336 = scmp.ge.s32.totalorder %s335, %s35
    $region146: #{tpu_custom_call.1} parent=1 // loop_header_branch
      %339 = sbr.rel (%p336) target = $region150
    $region147: #{tpu_custom_call.1} parent=1 // loop_body
      %s340 = scalar_lea.sflag [#allocation3], 6
      %s341 = smul.u32 1, 1
      %s342 = sshll.u32 %s341, 4
      %343 = dma.done %s340, %s342
    $region148: #{tpu_custom_call.1} parent=1 // loop_footer
      %s337 = sadd.s32 %s335, 1
    $region149: #{tpu_custom_call.1} parent=1 // loop_footer_branch
      %334 = sbr.rel target = $region145
    $region150: #{tpu_custom_call.1} parent=1 // loop_exit
      _
    // While loop
    $region151: #{tpu_custom_call.1} parent=1 // loop_pre_header
      _
    $region152: #{tpu_custom_call.1} parent=1 // loop_header
      %s345 = sphi 0, %s347
      %p346 = scmp.ge.s32.totalorder %s345, %s35
    $region153: #{tpu_custom_call.1} parent=1 // loop_header_branch
      %349 = sbr.rel (%p346) target = $region157
    $region154: #{tpu_custom_call.1} parent=1 // loop_body
      %s350 = scalar_lea.sflag [#allocation3], 7
      %s351 = smul.u32 1, 1
      %s352 = sshll.u32 %s351, 4
      %353 = dma.done %s350, %s352
    $region155: #{tpu_custom_call.1} parent=1 // loop_footer
      %s347 = sadd.s32 %s345, 1
    $region156: #{tpu_custom_call.1} parent=1 // loop_footer_branch
      %344 = sbr.rel target = $region152
    $region157: #{tpu_custom_call.1} parent=1 // loop_exit
      _
    %s354 = sld [smem:[#allocation6]]
    %v355 = vld [vmem:[#allocation7] sm:$0xff]
    %v356 = vpack.c.bf16 %v355, %v355
    %v357 = vld [vmem:[#allocation2] sm:$0xff]
    %v358 = vld [vmem:[#allocation2 + $0x8] sm:$0xff]
    %v359 = vld [vmem:[#allocation2 + $0x10] sm:$0xff]
    %v360 = vld [vmem:[#allocation2 + $0x18] sm:$0xff]
    %v361 = vld [vmem:[#allocation2 + $0x20] sm:$0xff]
    %v362 = vld [vmem:[#allocation2 + $0x28] sm:$0xff]
    %v363 = vld [vmem:[#allocation2 + $0x30] sm:$0xff]
    %v364 = vld [vmem:[#allocation2 + $0x38] sm:$0xff]
    %v365 = vld [vmem:[#allocation2 + $0x40] sm:$0xff]
    %v366 = vld [vmem:[#allocation2 + $0x48] sm:$0xff]
    %v367 = vld [vmem:[#allocation2 + $0x50] sm:$0xff]
    %v368 = vld [vmem:[#allocation2 + $0x58] sm:$0xff]
    %v369 = vld [vmem:[#allocation2 + $0x60] sm:$0xff]
    %v370 = vld [vmem:[#allocation2 + $0x68] sm:$0xff]
    %v371 = vld [vmem:[#allocation2 + $0x70] sm:$0xff]
    %v372 = vld [vmem:[#allocation2 + $0x78] sm:$0xff]
    %v373 = vld [vmem:[#allocation2 + $0x80] sm:$0xff]
    %v374 = vld [vmem:[#allocation2 + $0x88] sm:$0xff]
    %v375 = vld [vmem:[#allocation2 + $0x90] sm:$0xff]
    %v376 = vld [vmem:[#allocation2 + $0x98] sm:$0xff]
    %v377 = vld [vmem:[#allocation2 + $0xa0] sm:$0xff]
    %v378 = vld [vmem:[#allocation2 + $0xa8] sm:$0xff]
    %v379 = vld [vmem:[#allocation2 + $0xb0] sm:$0xff]
    %v380 = vld [vmem:[#allocation2 + $0xb8] sm:$0xff]
    %v381 = vld [vmem:[#allocation2 + $0xc0] sm:$0xff]
    %v382 = vld [vmem:[#allocation2 + $0xc8] sm:$0xff]
    %v383 = vld [vmem:[#allocation2 + $0xd0] sm:$0xff]
    %v384 = vld [vmem:[#allocation2 + $0xd8] sm:$0xff]
    %v385 = vld [vmem:[#allocation2 + $0xe0] sm:$0xff]
    %v386 = vld [vmem:[#allocation2 + $0xe8] sm:$0xff]
    %v387 = vld [vmem:[#allocation2 + $0xf0] sm:$0xff]
    %v388 = vld [vmem:[#allocation2 + $0xf8] sm:$0xff]
    %v389 = vld [vmem:[#allocation2 + $0x100] sm:$0xff]
    %v390 = vld [vmem:[#allocation2 + $0x108] sm:$0xff]
    %v391 = vld [vmem:[#allocation2 + $0x110] sm:$0xff]
    %v392 = vld [vmem:[#allocation2 + $0x118] sm:$0xff]
    %v393 = vld [vmem:[#allocation2 + $0x120] sm:$0xff]
    %v394 = vld [vmem:[#allocation2 + $0x128] sm:$0xff]
    %v395 = vld [vmem:[#allocation2 + $0x130] sm:$0xff]
    %v396 = vld [vmem:[#allocation2 + $0x138] sm:$0xff]
    %v397 = vld [vmem:[#allocation2 + $0x140] sm:$0xff]
    %v398 = vld [vmem:[#allocation2 + $0x148] sm:$0xff]
    %v399 = vld [vmem:[#allocation2 + $0x150] sm:$0xff]
    %v400 = vld [vmem:[#allocation2 + $0x158] sm:$0xff]
    %v401 = vld [vmem:[#allocation2 + $0x160] sm:$0xff]
    %v402 = vld [vmem:[#allocation2 + $0x168] sm:$0xff]
    %v403 = vld [vmem:[#allocation2 + $0x170] sm:$0xff]
    %v404 = vld [vmem:[#allocation2 + $0x178] sm:$0xff]
    %v405 = vld [vmem:[#allocation2 + $0x180] sm:$0xff]
    %v406 = vld [vmem:[#allocation2 + $0x188] sm:$0xff]
    %v407 = vld [vmem:[#allocation2 + $0x190] sm:$0xff]
    %v408 = vld [vmem:[#allocation2 + $0x198] sm:$0xff]
    %v409 = vld [vmem:[#allocation2 + $0x1a0] sm:$0xff]
    %v410 = vld [vmem:[#allocation2 + $0x1a8] sm:$0xff]
    %v411 = vld [vmem:[#allocation2 + $0x1b0] sm:$0xff]
    %v412 = vld [vmem:[#allocation2 + $0x1b8] sm:$0xff]
    %v413 = vld [vmem:[#allocation2 + $0x1c0] sm:$0xff]
    %v414 = vld [vmem:[#allocation2 + $0x1c8] sm:$0xff]
    %v415 = vld [vmem:[#allocation2 + $0x1d0] sm:$0xff]
    %v416 = vld [vmem:[#allocation2 + $0x1d8] sm:$0xff]
    %v417 = vld [vmem:[#allocation2 + $0x1e0] sm:$0xff]
    %v418 = vld [vmem:[#allocation2 + $0x1e8] sm:$0xff]
    %v419 = vld [vmem:[#allocation2 + $0x1f0] sm:$0xff]
    %v420 = vld [vmem:[#allocation2 + $0x1f8] sm:$0xff]
    %v421 = vld [vmem:[#allocation2 + $0x200] sm:$0xff]
    %v422 = vld [vmem:[#allocation2 + $0x208] sm:$0xff]
    %v423 = vld [vmem:[#allocation2 + $0x210] sm:$0xff]
    %v424 = vld [vmem:[#allocation2 + $0x218] sm:$0xff]
    %v425 = vld [vmem:[#allocation2 + $0x220] sm:$0xff]
    %v426 = vld [vmem:[#allocation2 + $0x228] sm:$0xff]
    %v427 = vld [vmem:[#allocation2 + $0x230] sm:$0xff]
    %v428 = vld [vmem:[#allocation2 + $0x238] sm:$0xff]
    %v429 = vld [vmem:[#allocation2 + $0x240] sm:$0xff]
    %v430 = vld [vmem:[#allocation2 + $0x248] sm:$0xff]
    %v431 = vld [vmem:[#allocation2 + $0x250] sm:$0xff]
    %v432 = vld [vmem:[#allocation2 + $0x258] sm:$0xff]
    %v433 = vld [vmem:[#allocation2 + $0x260] sm:$0xff]
    %v434 = vld [vmem:[#allocation2 + $0x268] sm:$0xff]
    %v435 = vld [vmem:[#allocation2 + $0x270] sm:$0xff]
    %v436 = vld [vmem:[#allocation2 + $0x278] sm:$0xff]
    %v437 = vld [vmem:[#allocation2 + $0x280] sm:$0xff]
    %v438 = vld [vmem:[#allocation2 + $0x288] sm:$0xff]
    %v439 = vld [vmem:[#allocation2 + $0x290] sm:$0xff]
    %v440 = vld [vmem:[#allocation2 + $0x298] sm:$0xff]
    %v441 = vld [vmem:[#allocation2 + $0x2a0] sm:$0xff]
    %v442 = vld [vmem:[#allocation2 + $0x2a8] sm:$0xff]
    %v443 = vld [vmem:[#allocation2 + $0x2b0] sm:$0xff]
    %v444 = vld [vmem:[#allocation2 + $0x2b8] sm:$0xff]
    %v445 = vld [vmem:[#allocation2 + $0x2c0] sm:$0xff]
    %v446 = vld [vmem:[#allocation2 + $0x2c8] sm:$0xff]
    %v447 = vld [vmem:[#allocation2 + $0x2d0] sm:$0xff]
    %v448 = vld [vmem:[#allocation2 + $0x2d8] sm:$0xff]
    %v449 = vld [vmem:[#allocation2 + $0x2e0] sm:$0xff]
    %v450 = vld [vmem:[#allocation2 + $0x2e8] sm:$0xff]
    %v451 = vld [vmem:[#allocation2 + $0x2f0] sm:$0xff]
    %v452 = vld [vmem:[#allocation2 + $0x2f8] sm:$0xff]
    %v453 = vld [vmem:[#allocation2 + $0x300] sm:$0xff]
    %v454 = vld [vmem:[#allocation2 + $0x308] sm:$0xff]
    %v455 = vld [vmem:[#allocation2 + $0x310] sm:$0xff]
    %v456 = vld [vmem:[#allocation2 + $0x318] sm:$0xff]
    %v457 = vld [vmem:[#allocation2 + $0x320] sm:$0xff]
    %v458 = vld [vmem:[#allocation2 + $0x328] sm:$0xff]
    %v459 = vld [vmem:[#allocation2 + $0x330] sm:$0xff]
    %v460 = vld [vmem:[#allocation2 + $0x338] sm:$0xff]
    %v461 = vld [vmem:[#allocation2 + $0x340] sm:$0xff]
    %v462 = vld [vmem:[#allocation2 + $0x348] sm:$0xff]
    %v463 = vld [vmem:[#allocation2 + $0x350] sm:$0xff]
    %v464 = vld [vmem:[#allocation2 + $0x358] sm:$0xff]
    %v465 = vld [vmem:[#allocation2 + $0x360] sm:$0xff]
    %v466 = vld [vmem:[#allocation2 + $0x368] sm:$0xff]
    %v467 = vld [vmem:[#allocation2 + $0x370] sm:$0xff]
    %v468 = vld [vmem:[#allocation2 + $0x378] sm:$0xff]
    %v469 = vld [vmem:[#allocation2 + $0x380] sm:$0xff]
    %v470 = vld [vmem:[#allocation2 + $0x388] sm:$0xff]
    %v471 = vld [vmem:[#allocation2 + $0x390] sm:$0xff]
    %v472 = vld [vmem:[#allocation2 + $0x398] sm:$0xff]
    %v473 = vld [vmem:[#allocation2 + $0x3a0] sm:$0xff]
    %v474 = vld [vmem:[#allocation2 + $0x3a8] sm:$0xff]
    %v475 = vld [vmem:[#allocation2 + $0x3b0] sm:$0xff]
    %v476 = vld [vmem:[#allocation2 + $0x3b8] sm:$0xff]
    %v477 = vld [vmem:[#allocation2 + $0x3c0] sm:$0xff]
    %v478 = vld [vmem:[#allocation2 + $0x3c8] sm:$0xff]
    %v479 = vld [vmem:[#allocation2 + $0x3d0] sm:$0xff]
    %v480 = vld [vmem:[#allocation2 + $0x3d8] sm:$0xff]
    %v481 = vld [vmem:[#allocation2 + $0x3e0] sm:$0xff]
    %v482 = vld [vmem:[#allocation2 + $0x3e8] sm:$0xff]
    %v483 = vld [vmem:[#allocation2 + $0x3f0] sm:$0xff]
    %v484 = vld [vmem:[#allocation2 + $0x3f8] sm:$0xff]
    %v485 = vpack.c.bf16 %v358, %v357
    %v486 = vpack.c.bf16 %v360, %v359
    %v487 = vpack.c.bf16 %v362, %v361
    %v488 = vpack.c.bf16 %v364, %v363
    %v489 = vpack.c.bf16 %v366, %v365
    %v490 = vpack.c.bf16 %v368, %v367
    %v491 = vpack.c.bf16 %v370, %v369
    %v492 = vpack.c.bf16 %v372, %v371
    %v493 = vpack.c.bf16 %v374, %v373
    %v494 = vpack.c.bf16 %v376, %v375
    %v495 = vpack.c.bf16 %v378, %v377
    %v496 = vpack.c.bf16 %v380, %v379
    %v497 = vpack.c.bf16 %v382, %v381
    %v498 = vpack.c.bf16 %v384, %v383
    %v499 = vpack.c.bf16 %v386, %v385
    %v500 = vpack.c.bf16 %v388, %v387
    %v501 = vpack.c.bf16 %v390, %v389
    %v502 = vpack.c.bf16 %v392, %v391
    %v503 = vpack.c.bf16 %v394, %v393
    %v504 = vpack.c.bf16 %v396, %v395
    %v505 = vpack.c.bf16 %v398, %v397
    %v506 = vpack.c.bf16 %v400, %v399
    %v507 = vpack.c.bf16 %v402, %v401
    %v508 = vpack.c.bf16 %v404, %v403
    %v509 = vpack.c.bf16 %v406, %v405
    %v510 = vpack.c.bf16 %v408, %v407
    %v511 = vpack.c.bf16 %v410, %v409
    %v512 = vpack.c.bf16 %v412, %v411
    %v513 = vpack.c.bf16 %v414, %v413
    %v514 = vpack.c.bf16 %v416, %v415
    %v515 = vpack.c.bf16 %v418, %v417
    %v516 = vpack.c.bf16 %v420, %v419
    %v517 = vpack.c.bf16 %v422, %v421
    %v518 = vpack.c.bf16 %v424, %v423
    %v519 = vpack.c.bf16 %v426, %v425
    %v520 = vpack.c.bf16 %v428, %v427
    %v521 = vpack.c.bf16 %v430, %v429
    %v522 = vpack.c.bf16 %v432, %v431
    %v523 = vpack.c.bf16 %v434, %v433
    %v524 = vpack.c.bf16 %v436, %v435
    %v525 = vpack.c.bf16 %v438, %v437
    %v526 = vpack.c.bf16 %v440, %v439
    %v527 = vpack.c.bf16 %v442, %v441
    %v528 = vpack.c.bf16 %v444, %v443
    %v529 = vpack.c.bf16 %v446, %v445
    %v530 = vpack.c.bf16 %v448, %v447
    %v531 = vpack.c.bf16 %v450, %v449
    %v532 = vpack.c.bf16 %v452, %v451
    %v533 = vpack.c.bf16 %v454, %v453
    %v534 = vpack.c.bf16 %v456, %v455
    %v535 = vpack.c.bf16 %v458, %v457
    %v536 = vpack.c.bf16 %v460, %v459
    %v537 = vpack.c.bf16 %v462, %v461
    %v538 = vpack.c.bf16 %v464, %v463
    %v539 = vpack.c.bf16 %v466, %v465
    %v540 = vpack.c.bf16 %v468, %v467
    %v541 = vpack.c.bf16 %v470, %v469
    %v542 = vpack.c.bf16 %v472, %v471
    %v543 = vpack.c.bf16 %v474, %v473
    %v544 = vpack.c.bf16 %v476, %v475
    %v545 = vpack.c.bf16 %v478, %v477
    %v546 = vpack.c.bf16 %v480, %v479
    %v547 = vpack.c.bf16 %v482, %v481
    %v548 = vpack.c.bf16 %v484, %v483
    %549 = vmatprep.subr.bf16.mxu0 0
    %550 = vmatpush1.bf16.xpose.msra.mxu0 %v485
    %551 = vmatprep.subr.bf16.mxu0 0
    %552 = vmatpush1.bf16.xpose.msra.mxu0 %v486
    %553 = vmatprep.subr.bf16.mxu0 0
    %554 = vmatpush1.bf16.xpose.msra.mxu0 %v487
    %555 = vmatprep.subr.bf16.mxu0 0
    %556 = vmatpush1.bf16.xpose.msra.mxu0 %v488
    %557 = vmatprep.subr.bf16.mxu0 0
    %558 = vmatpush1.bf16.xpose.msra.mxu0 %v489
    %559 = vmatprep.subr.bf16.mxu0 0
    %560 = vmatpush1.bf16.xpose.msra.mxu0 %v490
    %561 = vmatprep.subr.bf16.mxu0 0
    %562 = vmatpush1.bf16.xpose.msra.mxu0 %v491
    %563 = vmatprep.subr.bf16.mxu0 0
    %564 = vmatpush1.bf16.xpose.msra.mxu0 %v492
    %565 = vmatprep.subr.bf16.mxu0 0
    %566 = vmatpush1.bf16.xpose.msra.mxu0 %v493
    %567 = vmatprep.subr.bf16.mxu0 0
    %568 = vmatpush1.bf16.xpose.msra.mxu0 %v494
    %569 = vmatprep.subr.bf16.mxu0 0
    %570 = vmatpush1.bf16.xpose.msra.mxu0 %v495
    %571 = vmatprep.subr.bf16.mxu0 0
    %572 = vmatpush1.bf16.xpose.msra.mxu0 %v496
    %573 = vmatprep.subr.bf16.mxu0 0
    %574 = vmatpush1.bf16.xpose.msra.mxu0 %v497
    %575 = vmatprep.subr.bf16.mxu0 0
    %576 = vmatpush1.bf16.xpose.msra.mxu0 %v498
    %577 = vmatprep.subr.bf16.mxu0 0
    %578 = vmatpush1.bf16.xpose.msra.mxu0 %v499
    %579 = vmatprep.subr.bf16.mxu0 0
    %580 = vmatpush1.bf16.xpose.msra.mxu0 %v500
    %581 = vmatprep.mubr.bf16.mxu0 0
    %582 = vmatmul.mubr.bf16.gmra.mrb[0].mxu0 %v356
    %v583 = vpop.f32.mrb[0].mxu0
    %v584 = vadd.f32 0.0, %v583
    %v585 = vpop.f32.mrb[0].mxu0
    %v586 = vadd.f32 0.0, %v585
    %v587 = vpop.f32.mrb[0].mxu0
    %v588 = vpop.f32.mrb[0].mxu0
    %589 = vdwg.mxu0
    %590 = vmatprep.subr.bf16.mxu0 0
    %591 = vmatpush1.bf16.xpose.msra.mxu0 %v501
    %592 = vmatprep.subr.bf16.mxu0 0
    %593 = vmatpush1.bf16.xpose.msra.mxu0 %v502
    %594 = vmatprep.subr.bf16.mxu0 0
    %595 = vmatpush1.bf16.xpose.msra.mxu0 %v503
    %596 = vmatprep.subr.bf16.mxu0 0
    %597 = vmatpush1.bf16.xpose.msra.mxu0 %v504
    %598 = vmatprep.subr.bf16.mxu0 0
    %599 = vmatpush1.bf16.xpose.msra.mxu0 %v505
    %600 = vmatprep.subr.bf16.mxu0 0
    %601 = vmatpush1.bf16.xpose.msra.mxu0 %v506
    %602 = vmatprep.subr.bf16.mxu0 0
    %603 = vmatpush1.bf16.xpose.msra.mxu0 %v507
    %604 = vmatprep.subr.bf16.mxu0 0
    %605 = vmatpush1.bf16.xpose.msra.mxu0 %v508
    %606 = vmatprep.subr.bf16.mxu0 0
    %607 = vmatpush1.bf16.xpose.msra.mxu0 %v509
    %608 = vmatprep.subr.bf16.mxu0 0
    %609 = vmatpush1.bf16.xpose.msra.mxu0 %v510
    %610 = vmatprep.subr.bf16.mxu0 0
    %611 = vmatpush1.bf16.xpose.msra.mxu0 %v511
    %612 = vmatprep.subr.bf16.mxu0 0
    %613 = vmatpush1.bf16.xpose.msra.mxu0 %v512
    %614 = vmatprep.subr.bf16.mxu0 0
    %615 = vmatpush1.bf16.xpose.msra.mxu0 %v513
    %616 = vmatprep.subr.bf16.mxu0 0
    %617 = vmatpush1.bf16.xpose.msra.mxu0 %v514
    %618 = vmatprep.subr.bf16.mxu0 0
    %619 = vmatpush1.bf16.xpose.msra.mxu0 %v515
    %620 = vmatprep.subr.bf16.mxu0 0
    %621 = vmatpush1.bf16.xpose.msra.mxu0 %v516
    %622 = vmatprep.mubr.bf16.mxu0 0
    %623 = vmatmul.mubr.bf16.gmra.mrb[0].mxu0 %v356
    %v624 = vpop.f32.mrb[0].mxu0
    %v625 = vadd.f32 0.0, %v624
    %v626 = vpop.f32.mrb[0].mxu0
    %v627 = vadd.f32 0.0, %v626
    %v628 = vpop.f32.mrb[0].mxu0
    %v629 = vpop.f32.mrb[0].mxu0
    %630 = vdwg.mxu0
    %631 = vmatprep.subr.bf16.mxu0 0
    %632 = vmatpush1.bf16.xpose.msra.mxu0 %v517
    %633 = vmatprep.subr.bf16.mxu0 0
    %634 = vmatpush1.bf16.xpose.msra.mxu0 %v518
    %635 = vmatprep.subr.bf16.mxu0 0
    %636 = vmatpush1.bf16.xpose.msra.mxu0 %v519
    %637 = vmatprep.subr.bf16.mxu0 0
    %638 = vmatpush1.bf16.xpose.msra.mxu0 %v520
    %639 = vmatprep.subr.bf16.mxu0 0
    %640 = vmatpush1.bf16.xpose.msra.mxu0 %v521
    %641 = vmatprep.subr.bf16.mxu0 0
    %642 = vmatpush1.bf16.xpose.msra.mxu0 %v522
    %643 = vmatprep.subr.bf16.mxu0 0
    %644 = vmatpush1.bf16.xpose.msra.mxu0 %v523
    %645 = vmatprep.subr.bf16.mxu0 0
    %646 = vmatpush1.bf16.xpose.msra.mxu0 %v524
    %647 = vmatprep.subr.bf16.mxu0 0
    %648 = vmatpush1.bf16.xpose.msra.mxu0 %v525
    %649 = vmatprep.subr.bf16.mxu0 0
    %650 = vmatpush1.bf16.xpose.msra.mxu0 %v526
    %651 = vmatprep.subr.bf16.mxu0 0
    %652 = vmatpush1.bf16.xpose.msra.mxu0 %v527
    %653 = vmatprep.subr.bf16.mxu0 0
    %654 = vmatpush1.bf16.xpose.msra.mxu0 %v528
    %655 = vmatprep.subr.bf16.mxu0 0
    %656 = vmatpush1.bf16.xpose.msra.mxu0 %v529
    %657 = vmatprep.subr.bf16.mxu0 0
    %658 = vmatpush1.bf16.xpose.msra.mxu0 %v530
    %659 = vmatprep.subr.bf16.mxu0 0
    %660 = vmatpush1.bf16.xpose.msra.mxu0 %v531
    %661 = vmatprep.subr.bf16.mxu0 0
    %662 = vmatpush1.bf16.xpose.msra.mxu0 %v532
    %663 = vmatprep.mubr.bf16.mxu0 0
    %664 = vmatmul.mubr.bf16.gmra.mrb[0].mxu0 %v356
    %v665 = vpop.f32.mrb[0].mxu0
    %v666 = vadd.f32 0.0, %v665
    %v667 = vpop.f32.mrb[0].mxu0
    %v668 = vadd.f32 0.0, %v667
    %v669 = vpop.f32.mrb[0].mxu0
    %v670 = vpop.f32.mrb[0].mxu0
    %671 = vdwg.mxu0
    %672 = vmatprep.subr.bf16.mxu0 0
    %673 = vmatpush1.bf16.xpose.msra.mxu0 %v533
    %674 = vmatprep.subr.bf16.mxu0 0
    %675 = vmatpush1.bf16.xpose.msra.mxu0 %v534
    %676 = vmatprep.subr.bf16.mxu0 0
    %677 = vmatpush1.bf16.xpose.msra.mxu0 %v535
    %678 = vmatprep.subr.bf16.mxu0 0
    %679 = vmatpush1.bf16.xpose.msra.mxu0 %v536
    %680 = vmatprep.subr.bf16.mxu0 0
    %681 = vmatpush1.bf16.xpose.msra.mxu0 %v537
    %682 = vmatprep.subr.bf16.mxu0 0
    %683 = vmatpush1.bf16.xpose.msra.mxu0 %v538
    %684 = vmatprep.subr.bf16.mxu0 0
    %685 = vmatpush1.bf16.xpose.msra.mxu0 %v539
    %686 = vmatprep.subr.bf16.mxu0 0
    %687 = vmatpush1.bf16.xpose.msra.mxu0 %v540
    %688 = vmatprep.subr.bf16.mxu0 0
    %689 = vmatpush1.bf16.xpose.msra.mxu0 %v541
    %690 = vmatprep.subr.bf16.mxu0 0
    %691 = vmatpush1.bf16.xpose.msra.mxu0 %v542
    %692 = vmatprep.subr.bf16.mxu0 0
    %693 = vmatpush1.bf16.xpose.msra.mxu0 %v543
    %694 = vmatprep.subr.bf16.mxu0 0
    %695 = vmatpush1.bf16.xpose.msra.mxu0 %v544
    %696 = vmatprep.subr.bf16.mxu0 0
    %697 = vmatpush1.bf16.xpose.msra.mxu0 %v545
    %698 = vmatprep.subr.bf16.mxu0 0
    %699 = vmatpush1.bf16.xpose.msra.mxu0 %v546
    %700 = vmatprep.subr.bf16.mxu0 0
    %701 = vmatpush1.bf16.xpose.msra.mxu0 %v547
    %702 = vmatprep.subr.bf16.mxu0 0
    %703 = vmatpush1.bf16.xpose.msra.mxu0 %v548
    %704 = vmatprep.mubr.bf16.mxu0 0
    %705 = vmatmul.mubr.bf16.gmra.mrb[0].mxu0 %v356
    %v706 = vpop.f32.mrb[0].mxu0
    %v707 = vadd.f32 0.0, %v706
    %v708 = vpop.f32.mrb[0].mxu0
    %v709 = vadd.f32 0.0, %v708
    %v710 = vpop.f32.mrb[0].mxu0
    %v711 = vpop.f32.mrb[0].mxu0
    %712 = vdwg.mxu0
    %v713 = vlaneseq
    %v714 = vshrl.u32 %v713, 7
    %vm715 = vcmp.eq.s32.totalorder %v714, 0
    %v716 = vsel %vm715, 1, 0
    %vm717 = vcmp.eq.s32.totalorder %v716, 1
    %v718 = vsel %vm717, %v584, 0.0
    %v719 = vadd.f32 %v718, 0.0
    %vm720 = vcmp.eq.s32.totalorder %v714, 1
    %v721 = vsel %vm720, 1, 0
    %vm722 = vcmp.eq.s32.totalorder %v721, 1
    %v723 = vsel %vm722, %v586, 0.0
    %v724 = vadd.f32 %v719, %v723
    %vm725 = vcmp.eq.s32.totalorder %v714, 2
    %v726 = vsel %vm725, 1, 0
    %vm727 = vcmp.eq.s32.totalorder %v726, 1
    %v728 = vsel %vm727, %v625, 0.0
    %v729 = vadd.f32 %v724, %v728
    %vm730 = vcmp.eq.s32.totalorder %v714, 3
    %v731 = vsel %vm730, 1, 0
    %vm732 = vcmp.eq.s32.totalorder %v731, 1
    %v733 = vsel %vm732, %v627, 0.0
    %v734 = vadd.f32 %v729, %v733
    %vm735 = vcmp.eq.s32.totalorder %v714, 4
    %v736 = vsel %vm735, 1, 0
    %vm737 = vcmp.eq.s32.totalorder %v736, 1
    %v738 = vsel %vm737, %v666, 0.0
    %v739 = vadd.f32 %v734, %v738
    %vm740 = vcmp.eq.s32.totalorder %v714, 5
    %v741 = vsel %vm740, 1, 0
    %vm742 = vcmp.eq.s32.totalorder %v741, 1
    %v743 = vsel %vm742, %v668, 0.0
    %v744 = vadd.f32 %v739, %v743
    %vm745 = vcmp.eq.s32.totalorder %v714, 6
    %v746 = vsel %vm745, 1, 0
    %vm747 = vcmp.eq.s32.totalorder %v746, 1
    %v748 = vsel %vm747, %v707, 0.0
    %v749 = vadd.f32 %v744, %v748
    %vm750 = vcmp.eq.s32.totalorder %v714, 7
    %v751 = vsel %vm750, 1, 0
    %vm752 = vcmp.eq.s32.totalorder %v751, 1
    %v753 = vsel %vm752, %v709, 0.0
    %v754 = vadd.f32 %v749, %v753
    %v755 = vlaneseq
    %v756 = vand.u32 %v755, 127
    %v757 = vstv %s32
    %v758 = vadd.s32 %v757, %v756
    %v759 = vmul.f32 %v754, 14.285714
    %v760 = vmul.f32 %v759, 1.442695
    %v761 = vpow.pop %v760
    %v762 = vstv %s354
    %v763 = vmul.f32 %v761, %v762
    %vm764 = vcmp.lt.s32.totalorder %v758, 16
    %v765 = vsel %vm764, %v763, 0.0
    %766 = vst [vmem:[#allocation10] sm:$0xff] %v765
    // Predicated region
    $region158: #{tpu_custom_call.1} parent=1 // pred_check
      _
    $region159: #{tpu_custom_call.1} parent=1 // pred_check_branch
      %768 = sbr.rel (0) target = $region161
    $region160: #{tpu_custom_call.1} parent=1 // pred_region
      %s770 = ssub.s32 128, 128
      %771 = vsyncadd [#allocation9], %s770
      %s773 = sshll.u32 [#allocation10], 4
      %s774 = int_to_ptr.vmem [resolvable:$true] %s773
      %776 = dma.vmem_to_hbm [thread:$0]  %s774, 128, %s4, [#allocation9]
    $region161: #{tpu_custom_call.1} parent=1 // pred_fallthru
      _
    // Predicated region
    $region162: #{tpu_custom_call.1} parent=1 // pred_check
      _
    $region163: #{tpu_custom_call.1} parent=1 // pred_check_branch
      %778 = sbr.rel (0) target = $region165
    $region164: #{tpu_custom_call.1} parent=1 // pred_region
      %779 = dma.done [#allocation9], 128
    $region165: #{tpu_custom_call.1} parent=1 // pred_fallthru
      _
    %780 = vsyncpa [#allocation8], 1
    %781 = vsyncpa [#allocation9], 1
  %782 = vsyncmov [#allocation3]
  %s783 = vpop.sfrf %782
  %p784 = scmp.eq.s32.totalorder %s783, 0
  %p785 = pneg %p784
  %787 = shalt.err (%p785)
  %s788 = scalar_lea.sflag [#allocation3], 1
  %789 = vsyncmov %s788
  %s790 = vpop.sfrf %789
  %p791 = scmp.eq.s32.totalorder %s790, 0
  %p792 = pneg %p791
  %794 = shalt.err (%p792)
  %s795 = scalar_lea.sflag [#allocation3], 2
  %796 = vsyncmov %s795
  %s797 = vpop.sfrf %796
  %p798 = scmp.eq.s32.totalorder %s797, 0
  %p799 = pneg %p798
  %801 = shalt.err (%p799)
  %s802 = scalar_lea.sflag [#allocation3], 3
  %803 = vsyncmov %s802
  %s804 = vpop.sfrf %803
  %p805 = scmp.eq.s32.totalorder %s804, 0
  %p806 = pneg %p805
  %808 = shalt.err (%p806)
  %s809 = scalar_lea.sflag [#allocation3], 4
  %810 = vsyncmov %s809
  %s811 = vpop.sfrf %810
  %p812 = scmp.eq.s32.totalorder %s811, 0
  %p813 = pneg %p812
  %815 = shalt.err (%p813)
  %s816 = scalar_lea.sflag [#allocation3], 5
  %817 = vsyncmov %s816
  %s818 = vpop.sfrf %817
  %p819 = scmp.eq.s32.totalorder %s818, 0
  %p820 = pneg %p819
  %822 = shalt.err (%p820)
  %s823 = scalar_lea.sflag [#allocation3], 6
  %824 = vsyncmov %s823
  %s825 = vpop.sfrf %824
  %p826 = scmp.eq.s32.totalorder %s825, 0
  %p827 = pneg %p826
  %829 = shalt.err (%p827)
  %s830 = scalar_lea.sflag [#allocation3], 7
  %831 = vsyncmov %s830
  %s832 = vpop.sfrf %831
  %p833 = scmp.eq.s32.totalorder %s832, 0
  %p834 = pneg %p833
  %836 = shalt.err (%p834)

</llo_original>
